<compile_context>
chip_gen: v7x
topology: tpu7x:2x2x1
jax: 0.10.0
libtpu: 0.0.40
codegen_flags: <defaults>
</compile_context>

<pallas_src>
import functools

import jax
import jax.numpy as jnp
from jax import lax
from jax.experimental import pallas as pl
from jax.experimental.pallas import tpu as pltpu


def _round_up(x, m):
    return (x + m - 1) // m * m


def _pick_tm(mq, cap):
    """Row-tile: multiple of 16, <= cap, and >=2 grid blocks whenever mq allows (v7x)."""
    if mq >= 32:
        return min(cap, _round_up(pl.cdiv(mq, 2), 16))
    return _round_up(max(mq, 1), 16)


# ----------------------------------------------------------------------------
# Pallas kernels
# ----------------------------------------------------------------------------
def _conv_relu_pool_kernel(p_ref, w_ref, b_ref, o_ref, *, tm):
    """Fused im2col-GEMM + bias + ReLU + 2x2/2 max-pool (one GEMM over all 4 taps).

    p_ref: (4*TM, Kp) bf16 -- tap-major im2col rows for this TM block
    w_ref: (Kp, OCp)  bf16
    b_ref: (1, OCp)   f32
    o_ref: (TM, OCp)  bf16 -- pooled, ReLU'd conv rows ordered (n, ph, pw)
    """
    acc = jnp.dot(p_ref[...], w_ref[...], preferred_element_type=jnp.float32)
    pooled = jnp.maximum(jnp.maximum(acc[0:tm], acc[tm:2 * tm]),
                         jnp.maximum(acc[2 * tm:3 * tm], acc[3 * tm:4 * tm]))
    # max_t(x_t) + b == max_t(x_t + b);  ReLU is monotone -> equals pool(relu(conv))
    o_ref[...] = jnp.maximum(pooled + b_ref[...], 0.0).astype(o_ref.dtype)


def _mlp_logsoftmax_kernel(x_ref, w1_ref, b1_ref, w2_ref, b2_ref, w3_ref, b3_ref,
                           o_ref):
    """fc1+ReLU -> fc2+ReLU -> fc3 -> log_softmax, all lane-padded to 128.

    Padded class columns carry -1e30 via the fc3 bias padding, so no explicit mask
    is needed; the softmax epilogue stays in f32.
    """
    h = jnp.dot(x_ref[...], w1_ref[...], preferred_element_type=jnp.float32) + b1_ref[...]
    h = jnp.maximum(h, 0.0)
    h = jnp.dot(h.astype(jnp.bfloat16), w2_ref[...],
                preferred_element_type=jnp.float32) + b2_ref[...]
    h = jnp.maximum(h, 0.0)
    logits = jnp.dot(h.astype(jnp.bfloat16), w3_ref[...],
                     preferred_element_type=jnp.float32) + b3_ref[...]
    m = jnp.max(logits, axis=1, keepdims=True)
    s = logits - m
    lse = jnp.log(jnp.sum(jnp.exp(s), axis=1, keepdims=True))
    o_ref[...] = s - lse


# ----------------------------------------------------------------------------
# Wrappers
# ----------------------------------------------------------------------------
def conv_relu_pool(x, w, b, *, tm_cap=1024):
    """maxpool2x2(relu(conv2d(x, w, b))).  x is NHWC; w is PyTorch (OC, C, KH, KW).

    Returns NHWC bf16 of shape (N, PH, PW, OC)."""
    x = x.astype(jnp.bfloat16)                   # all glue below runs in bf16
    N, H, W, C = x.shape
    OC, _, KH, KW = w.shape
    OH, OW = H - KH + 1, W - KW + 1
    PH, PW = OH // 2, OW // 2
    CK = KH * KW * C
    Mq = N * PH * PW

    # --- JAX glue (bf16): NHWC im2col; patch columns ordered (kh, kw, c) ---
    cols = jnp.concatenate(
        [x[:, i:i + OH, j:j + OW, :] for i in range(KH) for j in range(KW)],
        axis=-1)                                                    # (N, OH, OW, CK)
    taps = jnp.stack(
        [cols[:, dy:2 * PH:2, dx:2 * PW:2, :].reshape(Mq, CK)
         for dy in (0, 1) for dx in (0, 1)], axis=0)                # (4, Mq, CK)

    # --- pad to lane/MXU-friendly shapes; tap-major layout inside each TM block ---
    Kp = _round_up(CK, 128)
    OCp = _round_up(OC, 128)
    TM = _pick_tm(Mq, tm_cap)
    Mp = _round_up(Mq, TM)
    grid_m = Mp // TM
    taps = jnp.pad(taps, ((0, 0), (0, Mp - Mq), (0, Kp - CK)))
    taps = (taps.reshape(4, grid_m, TM, Kp).transpose(1, 0, 2, 3)
                .reshape(grid_m * 4 * TM, Kp))

    # weight columns match the (kh, kw, c) patch ordering
    w_mat = jnp.pad(w.transpose(2, 3, 1, 0).reshape(CK, OC),
                    ((0, Kp - CK), (0, OCp - OC))).astype(jnp.bfloat16)
    b_mat = jnp.pad(b.reshape(1, OC), ((0, 0), (0, OCp - OC))).astype(jnp.float32)

    out = pl.pallas_call(
        functools.partial(_conv_relu_pool_kernel, tm=TM),
        out_shape=jax.ShapeDtypeStruct((Mp, OCp), jnp.bfloat16),
        grid=(grid_m,),
        in_specs=[
            pl.BlockSpec((4 * TM, Kp), lambda i: (i, 0)),
            pl.BlockSpec((Kp, OCp), lambda i: (0, 0)),
            pl.BlockSpec((1, OCp), lambda i: (0, 0)),
        ],
        out_specs=pl.BlockSpec((TM, OCp), lambda i: (i, 0)),
        compiler_params=pltpu.CompilerParams(dimension_semantics=("parallel",)),
    )(taps, w_mat, b_mat)

    # rows (n, ph, pw), cols oc  ->  NHWC (N, PH, PW, OC); stays bf16, no transpose
    return out[:Mq, :OC].reshape(N, PH, PW, OC)


def mlp_head(feat, p, *, tm_cap=512):
    """fc1+ReLU -> fc2+ReLU -> fc3 -> log_softmax in one Pallas kernel, tiled over M.

    feat rows are the NHWC flatten of conv2's output; p['fc1_w'] must already be
    column-permuted to that order."""
    M, K = feat.shape
    Kp = _round_up(K, 128)
    H1, H2, NC = p["fc1_b"].shape[0], p["fc2_b"].shape[0], p["fc3_b"].shape[0]
    H1p, H2p, NCp = _round_up(H1, 128), _round_up(H2, 128), _round_up(NC, 128)
    TM = _pick_tm(M, tm_cap)
    Mp = _round_up(M, TM)
    grid_m = Mp // TM

    def padw(w, rows, cols):   # torch (out, in) -> (in_pad, out_pad), bf16
        return jnp.pad(w.T, ((0, rows - w.shape[1]),
                             (0, cols - w.shape[0]))).astype(jnp.bfloat16)

    def padb(b, cols, fill=0.0):
        return jnp.pad(b.reshape(1, -1), ((0, 0), (0, cols - b.shape[0])),
                       constant_values=fill).astype(jnp.float32)

    x = jnp.pad(feat.astype(jnp.bfloat16), ((0, Mp - M), (0, Kp - K)))
    out = pl.pallas_call(
        _mlp_logsoftmax_kernel,
        out_shape=jax.ShapeDtypeStruct((Mp, NCp), jnp.float32),
        grid=(grid_m,),
        in_specs=[
            pl.BlockSpec((TM, Kp), lambda i: (i, 0)),
            pl.BlockSpec((Kp, H1p), lambda i: (0, 0)),
            pl.BlockSpec((1, H1p), lambda i: (0, 0)),
            pl.BlockSpec((H1p, H2p), lambda i: (0, 0)),
            pl.BlockSpec((1, H2p), lambda i: (0, 0)),
            pl.BlockSpec((H2p, NCp), lambda i: (0, 0)),
            pl.BlockSpec((1, NCp), lambda i: (0, 0)),
        ],
        out_specs=pl.BlockSpec((TM, NCp), lambda i: (i, 0)),
        compiler_params=pltpu.CompilerParams(dimension_semantics=("parallel",)),
    )(x,
      padw(p["fc1_w"], Kp, H1p), padb(p["fc1_b"], H1p),
      padw(p["fc2_w"], H1p, H2p), padb(p["fc2_b"], H2p),
      padw(p["fc3_w"], H2p, NCp), padb(p["fc3_b"], NCp, fill=-1e30))
    return out[:M, :NC]


# ----------------------------------------------------------------------------
# Parameters (deterministic, PyTorch-style uniform(-1/sqrt(fan_in), +))
# ----------------------------------------------------------------------------
def init_params(key):
    def uni(key, shape, fan_in):
        bound = 1.0 / jnp.sqrt(float(fan_in))
        return jax.random.uniform(key, shape, jnp.float32, -bound, bound)

    ks = jax.random.split(key, 10)
    return {
        "conv1_w": uni(ks[0], (6, 3, 5, 5), 3 * 5 * 5),
        "conv1_b": uni(ks[1], (6,), 3 * 5 * 5),
        "conv2_w": uni(ks[2], (16, 6, 5, 5), 6 * 5 * 5),
        "conv2_b": uni(ks[3], (16,), 6 * 5 * 5),
        "fc1_w": uni(ks[4], (120, 400), 400),
        "fc1_b": uni(ks[5], (120,), 400),
        "fc2_w": uni(ks[6], (84, 120), 120),
        "fc2_b": uni(ks[7], (84,), 120),
        "fc3_w": uni(ks[8], (10, 84), 84),
        "fc3_b": uni(ks[9], (10,), 84),
    }


# ----------------------------------------------------------------------------
# Forward pass (mirrors max_pooling.forward)
# ----------------------------------------------------------------------------
def forward(params, x):
    # NCHW f32 -> NHWC bf16 once; everything downstream stays NHWC / bf16
    x = x.astype(jnp.bfloat16).transpose(0, 2, 3, 1)
    x = conv_relu_pool(x, params["conv1_w"], params["conv1_b"])   # (N, 14, 14, 6)
    x = conv_relu_pool(x, params["conv2_w"], params["conv2_b"])   # (N, 5, 5, 16)
    N, PH, PW, OC = x.shape
    feat = x.reshape(N, PH * PW * OC)                             # NHWC flatten
    # permute fc1 columns (c,h,w) -> (h,w,c) so the NHWC flatten matches torch's .view
    h1 = params["fc1_w"].shape[0]
    fc1_w = (params["fc1_w"].reshape(h1, OC, PH, PW)
             .transpose(0, 2, 3, 1).reshape(h1, PH * PW * OC))
    head = dict(params, fc1_w=fc1_w)
    return mlp_head(feat, head)


# ----------------------------------------------------------------------------
# Plain-JAX f32 reference (for a loose-tolerance correctness check)
# ----------------------------------------------------------------------------
def reference_forward(params, x):
    def conv(x, w, b):
        y = lax.conv_general_dilated(x, w, (1, 1), "VALID",
                                     dimension_numbers=("NCHW", "OIHW", "NCHW"))
        return y + b.reshape(1, -1, 1, 1)

    def pool(x):
        return lax.reduce_window(x, -jnp.inf, lax.max,
                                 (1, 1, 2, 2), (1, 1, 2, 2), "VALID")

    x = pool(jax.nn.relu(conv(x, params["conv1_w"], params["conv1_b"])))
    x = pool(jax.nn.relu(conv(x, params["conv2_w"], params["conv2_b"])))
    x = x.reshape(x.shape[0], -1)
    x = jax.nn.relu(x @ params["fc1_w"].T + params["fc1_b"])
    x = jax.nn.relu(x @ params["fc2_w"].T + params["fc2_b"])
    x = x @ params["fc3_w"].T + params["fc3_b"]
    return jax.nn.log_softmax(x, axis=1)


if __name__ == "__main__":
    key = jax.random.PRNGKey(0)
    pkey, xkey = jax.random.split(key)
    params = init_params(pkey)
    # CIFAR-sized input implied by the 16*5*5 flatten: (batch=2, C=3, 32, 32)
    x = jax.random.normal(xkey, (2, 3, 32, 32), jnp.float32)

    out = jax.block_until_ready(jax.jit(forward)(params, x))

    assert out.shape == (2, 10)
    # log_softmax rows must exponentiate-and-sum to ~1
    assert jnp.allclose(jnp.exp(out).sum(axis=1), 1.0, atol=1e-4)
    # loose-tolerance check vs f32 reference (bf16 MXU operands -> ~1e-2 level error)
    ref = reference_forward(params, x)
    max_err = float(jnp.max(jnp.abs(out - ref)))
    assert max_err < 5e-2, max_err
    print("KERNEL_OK")
</pallas_src>

<mosaic_0001>
module attributes {stable_mosaic.version = 11 : i64} {
  func.func @_conv_relu_pool_kernel(%arg0: i32, %arg1: memref<832x128xbf16, #tpu.memory_space<vmem>>, %arg2: memref<128x128xbf16, #tpu.memory_space<vmem>>, %arg3: memref<1x128xf32, #tpu.memory_space<vmem>>, %arg4: memref<208x128xbf16, #tpu.memory_space<vmem>>) attributes {dimension_semantics = [#tpu.dimension_semantics<parallel>], iteration_bounds = array<i64: 2>, scalar_prefetch = 0 : i64, scratch_operands = 0 : i64, tpu.core_type = #tpu.core_type<tc>, window_params = [{transform_indices = @transform_0, window_bounds = array<i64: 832, 128>}, {pipeline_mode = #tpu.pipeline_mode<synchronous>, transform_indices = @transform_1, window_bounds = array<i64: 128, 128>}, {pipeline_mode = #tpu.pipeline_mode<synchronous>, transform_indices = @transform_2, window_bounds = array<i64: 1, 128>}, {transform_indices = @transform_3, window_bounds = array<i64: 208, 128>}]} {
    %c0 = arith.constant 0 : index
    %c0_0 = arith.constant 0 : index
    %0 = vector.load %arg1[%c0, %c0_0] : memref<832x128xbf16, #tpu.memory_space<vmem>>, vector<832x128xbf16>
    %c0_1 = arith.constant 0 : index
    %c0_2 = arith.constant 0 : index
    %1 = vector.load %arg2[%c0_1, %c0_2] : memref<128x128xbf16, #tpu.memory_space<vmem>>, vector<128x128xbf16>
    %cst = arith.constant dense<0.000000e+00> : vector<832x128xf32>
    %2 = tpu.matmul %0, %1, %cst {dimension_numbers = #tpu.dot_dimension_numbers<[1], [0], [0], [1], [0, 0, 1, 1], [], []>} : vector<832x128xbf16>, vector<128x128xbf16>, vector<832x128xf32> -> vector<832x128xf32>
    %3 = vector.extract_strided_slice %2 {offsets = [0, 0], sizes = [208, 128], strides = [1, 1]} : vector<832x128xf32> to vector<208x128xf32>
    %4 = vector.extract_strided_slice %2 {offsets = [208, 0], sizes = [208, 128], strides = [1, 1]} : vector<832x128xf32> to vector<208x128xf32>
    %5 = arith.maximumf %3, %4 : vector<208x128xf32>
    %6 = vector.extract_strided_slice %2 {offsets = [416, 0], sizes = [208, 128], strides = [1, 1]} : vector<832x128xf32> to vector<208x128xf32>
    %7 = vector.extract_strided_slice %2 {offsets = [624, 0], sizes = [208, 128], strides = [1, 1]} : vector<832x128xf32> to vector<208x128xf32>
    %8 = arith.maximumf %6, %7 : vector<208x128xf32>
    %9 = arith.maximumf %5, %8 : vector<208x128xf32>
    %c0_3 = arith.constant 0 : index
    %c0_4 = arith.constant 0 : index
    %10 = vector.load %arg3[%c0_3, %c0_4] : memref<1x128xf32, #tpu.memory_space<vmem>>, vector<1x128xf32>
    %11 = vector.broadcast %10 : vector<1x128xf32> to vector<208x128xf32>
    %12 = arith.addf %9, %11 : vector<208x128xf32>
    %cst_5 = arith.constant 0.000000e+00 : f32
    %13 = vector.broadcast %cst_5 : f32 to vector<208x128xf32>
    %14 = arith.maximumf %12, %13 : vector<208x128xf32>
    %15 = arith.truncf %14 : vector<208x128xf32> to vector<208x128xbf16>
    %c0_6 = arith.constant 0 : index
    %c0_7 = arith.constant 0 : index
    %16 = vector.load %arg4[%c0_6, %c0_7] : memref<208x128xbf16, #tpu.memory_space<vmem>>, vector<208x128xbf16>
    tpu.vector_store %arg4[%c0_6, %c0_7], %15 {strides = array<i32>} : memref<208x128xbf16, #tpu.memory_space<vmem>>, vector<208x128xbf16>,
    return
  }
  func.func @transform_0(%arg0: i32) -> (i32, i32) {
    %c0_i32 = arith.constant 0 : i32
    %c0_i32_0 = arith.constant 0 : i32
    return %arg0, %c0_i32 : i32, i32
  }
  func.func @transform_1(%arg0: i32) -> (i32, i32) {
    %c0_i32 = arith.constant 0 : i32
    %c0_i32_0 = arith.constant 0 : i32
    %c0_i32_1 = arith.constant 0 : i32
    return %c0_i32, %c0_i32_0 : i32, i32
  }
  func.func @transform_2(%arg0: i32) -> (i32, i32) {
    %c0_i32 = arith.constant 0 : i32
    %c0_i32_0 = arith.constant 0 : i32
    %c0_i32_1 = arith.constant 0 : i32
    return %c0_i32, %c0_i32_0 : i32, i32
  }
  func.func @transform_3(%arg0: i32) -> (i32, i32) {
    %c0_i32 = arith.constant 0 : i32
    %c0_i32_0 = arith.constant 0 : i32
    return %arg0, %c0_i32 : i32, i32
  }
}

module attributes {stable_mosaic.version = 11 : i64} {
  func.func @_conv_relu_pool_kernel(%arg0: i32, %arg1: memref<128x256xbf16, #tpu.memory_space<vmem>>, %arg2: memref<256x128xbf16, #tpu.memory_space<vmem>>, %arg3: memref<1x128xf32, #tpu.memory_space<vmem>>, %arg4: memref<32x128xbf16, #tpu.memory_space<vmem>>) attributes {dimension_semantics = [#tpu.dimension_semantics<parallel>], iteration_bounds = array<i64: 2>, scalar_prefetch = 0 : i64, scratch_operands = 0 : i64, tpu.core_type = #tpu.core_type<tc>, window_params = [{transform_indices = @transform_0, window_bounds = array<i64: 128, 256>}, {pipeline_mode = #tpu.pipeline_mode<synchronous>, transform_indices = @transform_1, window_bounds = array<i64: 256, 128>}, {pipeline_mode = #tpu.pipeline_mode<synchronous>, transform_indices = @transform_2, window_bounds = array<i64: 1, 128>}, {transform_indices = @transform_3, window_bounds = array<i64: 32, 128>}]} {
    %c0 = arith.constant 0 : index
    %c0_0 = arith.constant 0 : index
    %0 = vector.load %arg1[%c0, %c0_0] : memref<128x256xbf16, #tpu.memory_space<vmem>>, vector<128x256xbf16>
    %c0_1 = arith.constant 0 : index
    %c0_2 = arith.constant 0 : index
    %1 = vector.load %arg2[%c0_1, %c0_2] : memref<256x128xbf16, #tpu.memory_space<vmem>>, vector<256x128xbf16>
    %cst = arith.constant dense<0.000000e+00> : vector<128x128xf32>
    %2 = tpu.matmul %0, %1, %cst {dimension_numbers = #tpu.dot_dimension_numbers<[1], [0], [0], [1], [0, 0, 1, 1], [], []>} : vector<128x256xbf16>, vector<256x128xbf16>, vector<128x128xf32> -> vector<128x128xf32>
    %3 = vector.extract_strided_slice %2 {offsets = [0, 0], sizes = [32, 128], strides = [1, 1]} : vector<128x128xf32> to vector<32x128xf32>
    %4 = vector.extract_strided_slice %2 {offsets = [32, 0], sizes = [32, 128], strides = [1, 1]} : vector<128x128xf32> to vector<32x128xf32>
    %5 = arith.maximumf %3, %4 : vector<32x128xf32>
    %6 = vector.extract_strided_slice %2 {offsets = [64, 0], sizes = [32, 128], strides = [1, 1]} : vector<128x128xf32> to vector<32x128xf32>
    %7 = vector.extract_strided_slice %2 {offsets = [96, 0], sizes = [32, 128], strides = [1, 1]} : vector<128x128xf32> to vector<32x128xf32>
    %8 = arith.maximumf %6, %7 : vector<32x128xf32>
    %9 = arith.maximumf %5, %8 : vector<32x128xf32>
    %c0_3 = arith.constant 0 : index
    %c0_4 = arith.constant 0 : index
    %10 = vector.load %arg3[%c0_3, %c0_4] : memref<1x128xf32, #tpu.memory_space<vmem>>, vector<1x128xf32>
    %11 = vector.broadcast %10 : vector<1x128xf32> to vector<32x128xf32>
    %12 = arith.addf %9, %11 : vector<32x128xf32>
    %cst_5 = arith.constant 0.000000e+00 : f32
    %13 = vector.broadcast %cst_5 : f32 to vector<32x128xf32>
    %14 = arith.maximumf %12, %13 : vector<32x128xf32>
    %15 = arith.truncf %14 : vector<32x128xf32> to vector<32x128xbf16>
    %c0_6 = arith.constant 0 : index
    %c0_7 = arith.constant 0 : index
    %16 = vector.load %arg4[%c0_6, %c0_7] : memref<32x128xbf16, #tpu.memory_space<vmem>>, vector<32x128xbf16>
    tpu.vector_store %arg4[%c0_6, %c0_7], %15 {strides = array<i32>} : memref<32x128xbf16, #tpu.memory_space<vmem>>, vector<32x128xbf16>,
    return
  }
  func.func @transform_0(%arg0: i32) -> (i32, i32) {
    %c0_i32 = arith.constant 0 : i32
    %c0_i32_0 = arith.constant 0 : i32
    return %arg0, %c0_i32 : i32, i32
  }
  func.func @transform_1(%arg0: i32) -> (i32, i32) {
    %c0_i32 = arith.constant 0 : i32
    %c0_i32_0 = arith.constant 0 : i32
    %c0_i32_1 = arith.constant 0 : i32
    return %c0_i32, %c0_i32_0 : i32, i32
  }
  func.func @transform_2(%arg0: i32) -> (i32, i32) {
    %c0_i32 = arith.constant 0 : i32
    %c0_i32_0 = arith.constant 0 : i32
    %c0_i32_1 = arith.constant 0 : i32
    return %c0_i32, %c0_i32_0 : i32, i32
  }
  func.func @transform_3(%arg0: i32) -> (i32, i32) {
    %c0_i32 = arith.constant 0 : i32
    %c0_i32_0 = arith.constant 0 : i32
    return %arg0, %c0_i32 : i32, i32
  }
}

module attributes {stable_mosaic.version = 11 : i64} {
  func.func @_mlp_logsoftmax_kernel(%arg0: i32, %arg1: memref<16x512xbf16, #tpu.memory_space<vmem>>, %arg2: memref<512x128xbf16, #tpu.memory_space<vmem>>, %arg3: memref<1x128xf32, #tpu.memory_space<vmem>>, %arg4: memref<128x128xbf16, #tpu.memory_space<vmem>>, %arg5: memref<1x128xf32, #tpu.memory_space<vmem>>, %arg6: memref<128x128xbf16, #tpu.memory_space<vmem>>, %arg7: memref<1x128xf32, #tpu.memory_space<vmem>>, %arg8: memref<16x128xf32, #tpu.memory_space<vmem>>) attributes {dimension_semantics = [#tpu.dimension_semantics<parallel>], iteration_bounds = array<i64: 1>, scalar_prefetch = 0 : i64, scratch_operands = 0 : i64, tpu.core_type = #tpu.core_type<tc>, window_params = [{transform_indices = @transform_0, window_bounds = array<i64: 16, 512>}, {pipeline_mode = #tpu.pipeline_mode<synchronous>, transform_indices = @transform_1, window_bounds = array<i64: 512, 128>}, {pipeline_mode = #tpu.pipeline_mode<synchronous>, transform_indices = @transform_2, window_bounds = array<i64: 1, 128>}, {pipeline_mode = #tpu.pipeline_mode<synchronous>, transform_indices = @transform_3, window_bounds = array<i64: 128, 128>}, {pipeline_mode = #tpu.pipeline_mode<synchronous>, transform_indices = @transform_4, window_bounds = array<i64: 1, 128>}, {pipeline_mode = #tpu.pipeline_mode<synchronous>, transform_indices = @transform_5, window_bounds = array<i64: 128, 128>}, {pipeline_mode = #tpu.pipeline_mode<synchronous>, transform_indices = @transform_6, window_bounds = array<i64: 1, 128>}, {transform_indices = @transform_7, window_bounds = array<i64: 16, 128>}]} {
    %c0 = arith.constant 0 : index
    %c0_0 = arith.constant 0 : index
    %0 = vector.load %arg1[%c0, %c0_0] : memref<16x512xbf16, #tpu.memory_space<vmem>>, vector<16x512xbf16>
    %c0_1 = arith.constant 0 : index
    %c0_2 = arith.constant 0 : index
    %1 = vector.load %arg2[%c0_1, %c0_2] : memref<512x128xbf16, #tpu.memory_space<vmem>>, vector<512x128xbf16>
    %cst = arith.constant dense<0.000000e+00> : vector<16x128xf32>
    %2 = tpu.matmul %0, %1, %cst {dimension_numbers = #tpu.dot_dimension_numbers<[1], [0], [0], [1], [0, 0, 1, 1], [], []>} : vector<16x512xbf16>, vector<512x128xbf16>, vector<16x128xf32> -> vector<16x128xf32>
    %c0_3 = arith.constant 0 : index
    %c0_4 = arith.constant 0 : index
    %3 = vector.load %arg3[%c0_3, %c0_4] : memref<1x128xf32, #tpu.memory_space<vmem>>, vector<1x128xf32>
    %4 = vector.broadcast %3 : vector<1x128xf32> to vector<16x128xf32>
    %5 = arith.addf %2, %4 : vector<16x128xf32>
    %cst_5 = arith.constant 0.000000e+00 : f32
    %6 = vector.broadcast %cst_5 : f32 to vector<16x128xf32>
    %7 = arith.maximumf %5, %6 : vector<16x128xf32>
    %8 = arith.truncf %7 : vector<16x128xf32> to vector<16x128xbf16>
    %c0_6 = arith.constant 0 : index
    %c0_7 = arith.constant 0 : index
    %9 = vector.load %arg4[%c0_6, %c0_7] : memref<128x128xbf16, #tpu.memory_space<vmem>>, vector<128x128xbf16>
    %cst_8 = arith.constant dense<0.000000e+00> : vector<16x128xf32>
    %10 = tpu.matmul %8, %9, %cst_8 {dimension_numbers = #tpu.dot_dimension_numbers<[1], [0], [0], [1], [0, 0, 1, 1], [], []>} : vector<16x128xbf16>, vector<128x128xbf16>, vector<16x128xf32> -> vector<16x128xf32>
    %c0_9 = arith.constant 0 : index
    %c0_10 = arith.constant 0 : index
    %11 = vector.load %arg5[%c0_9, %c0_10] : memref<1x128xf32, #tpu.memory_space<vmem>>, vector<1x128xf32>
    %12 = vector.broadcast %11 : vector<1x128xf32> to vector<16x128xf32>
    %13 = arith.addf %10, %12 : vector<16x128xf32>
    %cst_11 = arith.constant 0.000000e+00 : f32
    %14 = vector.broadcast %cst_11 : f32 to vector<16x128xf32>
    %15 = arith.maximumf %13, %14 : vector<16x128xf32>
    %16 = arith.truncf %15 : vector<16x128xf32> to vector<16x128xbf16>
    %c0_12 = arith.constant 0 : index
    %c0_13 = arith.constant 0 : index
    %17 = vector.load %arg6[%c0_12, %c0_13] : memref<128x128xbf16, #tpu.memory_space<vmem>>, vector<128x128xbf16>
    %cst_14 = arith.constant dense<0.000000e+00> : vector<16x128xf32>
    %18 = tpu.matmul %16, %17, %cst_14 {dimension_numbers = #tpu.dot_dimension_numbers<[1], [0], [0], [1], [0, 0, 1, 1], [], []>} : vector<16x128xbf16>, vector<128x128xbf16>, vector<16x128xf32> -> vector<16x128xf32>
    %c0_15 = arith.constant 0 : index
    %c0_16 = arith.constant 0 : index
    %19 = vector.load %arg7[%c0_15, %c0_16] : memref<1x128xf32, #tpu.memory_space<vmem>>, vector<1x128xf32>
    %20 = vector.broadcast %19 : vector<1x128xf32> to vector<16x128xf32>
    %21 = arith.addf %18, %20 : vector<16x128xf32>
    %cst_17 = arith.constant dense<0xFF800000> : vector<16xf32>
    %22 = vector.multi_reduction <maximumf>, %21, %cst_17 [1] : vector<16x128xf32> to vector<16xf32>
    %23 = vector.shape_cast %22 : vector<16xf32> to vector<16x1xf32>
    %24 = vector.broadcast %23 : vector<16x1xf32> to vector<16x128xf32>
    %25 = arith.subf %21, %24 : vector<16x128xf32>
    %26 = math.exp %25 : vector<16x128xf32>
    %cst_18 = arith.constant dense<0.000000e+00> : vector<16xf32>
    %27 = vector.multi_reduction <add>, %26, %cst_18 [1] : vector<16x128xf32> to vector<16xf32>
    %28 = vector.shape_cast %27 : vector<16xf32> to vector<16x1xf32>
    %29 = math.log %28 : vector<16x1xf32>
    %30 = vector.broadcast %29 : vector<16x1xf32> to vector<16x128xf32>
    %31 = arith.subf %25, %30 : vector<16x128xf32>
    %c0_19 = arith.constant 0 : index
    %c0_20 = arith.constant 0 : index
    %32 = vector.load %arg8[%c0_19, %c0_20] : memref<16x128xf32, #tpu.memory_space<vmem>>, vector<16x128xf32>
    tpu.vector_store %arg8[%c0_19, %c0_20], %31 {strides = array<i32>} : memref<16x128xf32, #tpu.memory_space<vmem>>, vector<16x128xf32>,
    return
  }
  func.func @transform_0(%arg0: i32) -> (i32, i32) {
    %c0_i32 = arith.constant 0 : i32
    %c0_i32_0 = arith.constant 0 : i32
    return %arg0, %c0_i32 : i32, i32
  }
  func.func @transform_1(%arg0: i32) -> (i32, i32) {
    %c0_i32 = arith.constant 0 : i32
    %c0_i32_0 = arith.constant 0 : i32
    %c0_i32_1 = arith.constant 0 : i32
    return %c0_i32, %c0_i32_0 : i32, i32
  }
  func.func @transform_2(%arg0: i32) -> (i32, i32) {
    %c0_i32 = arith.constant 0 : i32
    %c0_i32_0 = arith.constant 0 : i32
    %c0_i32_1 = arith.constant 0 : i32
    return %c0_i32, %c0_i32_0 : i32, i32
  }
  func.func @transform_3(%arg0: i32) -> (i32, i32) {
    %c0_i32 = arith.constant 0 : i32
    %c0_i32_0 = arith.constant 0 : i32
    %c0_i32_1 = arith.constant 0 : i32
    return %c0_i32, %c0_i32_0 : i32, i32
  }
  func.func @transform_4(%arg0: i32) -> (i32, i32) {
    %c0_i32 = arith.constant 0 : i32
    %c0_i32_0 = arith.constant 0 : i32
    %c0_i32_1 = arith.constant 0 : i32
    return %c0_i32, %c0_i32_0 : i32, i32
  }
  func.func @transform_5(%arg0: i32) -> (i32, i32) {
    %c0_i32 = arith.constant 0 : i32
    %c0_i32_0 = arith.constant 0 : i32
    %c0_i32_1 = arith.constant 0 : i32
    return %c0_i32, %c0_i32_0 : i32, i32
  }
  func.func @transform_6(%arg0: i32) -> (i32, i32) {
    %c0_i32 = arith.constant 0 : i32
    %c0_i32_0 = arith.constant 0 : i32
    %c0_i32_1 = arith.constant 0 : i32
    return %c0_i32, %c0_i32_0 : i32, i32
  }
  func.func @transform_7(%arg0: i32) -> (i32, i32) {
    %c0_i32 = arith.constant 0 : i32
    %c0_i32_0 = arith.constant 0 : i32
    return %arg0, %c0_i32 : i32, i32
  }
}

</mosaic_0001>

<llo_original>
// kernel: forward.3
$region0: #{forward.3}
  #allocation0 [shape = 'u32[]', space=smem, size = 0x4, offset = 0x4, fixed_abs, tag = 'smem constant byte address 0x4 - core index']
  #allocation1 [shape = 'u32[144,128]{1,0:T(1,128)}', space=vmem, size = 0x12000, scoped, tag = 'internal scratch']
  %s0 = inlined_call_operand.vmem [shape: bf16[1664,128], index: 0, kind: input, shape index: {}]
  %s1 = inlined_call_operand.vmem [shape: bf16[128,128], index: 1, kind: input, shape index: {}]
  %s2 = inlined_call_operand.vmem [shape: f32[1,128], index: 2, kind: input, shape index: {}]
  %s3 = inlined_call_operand.vmem [shape: bf16[416,128], index: 3, kind: output, shape index: {}]
  %s4 = sld [smem:[#allocation0]]
  $region45: #{forward.3} parent=0
    _
  %s6 = ssub.s32 1, %s4
  %s7 = scalar_select 0, %s6, %s4
  loop: start=0, step=1, limit=4
  $region2: #{forward.3} parent=0 // loop_pre_header
    _
  $region3: #{forward.3} parent=0 // loop_header
    %s9 = sphi 0, %s13
    %p10 = scmp.ge.s32.totalorder %s9, 4
    %s19 = sphi 0, %s21
    %s22 = sphi 0, %s19
    %s23 = sphi 0, %s22
    %s39 = sphi 0, %s23
    %s43 = sphi 0, %s43
    %s45 = sphi 0, %s43
    %s46 = sphi 0, %s45
    %s60 = sphi 0, %s46
    %s64 = sphi 0, %s64
    %s66 = sphi 0, %s64
    %s67 = sphi 0, %s66
    %s81 = sphi 0, %s67
    %s87 = sphi 0, %s89
    %s90 = sphi 0, %s87
    %s91 = sphi 0, %s90
    %s107 = sphi 0, %s91
  $region4: #{forward.3} parent=0 // loop_header_branch
    %12 = sbr.rel (%p10) target = $region8
  $region5: #{forward.3} parent=0 // loop_body
    %s14 = ssub.s32 %s9, 1
    %s15 = ssub.s32 %s9, 2
    %s16 = sadd.s32 %s9, 1
    %s17 = ssub.s32 %s9, %s16
    %p18 = scmp.eq.s32.totalorder %s17, 0
    %s20 = sadd.s32 %s19, 1
    %s21 = scalar_select %p18, %s19, %s20
    %p24 = pneg %p18
    %p25 = scmp.eq.s32.totalorder %s9, 1
    %p26 = por %p24, %p25
    %p27 = scmp.ne.s32.totalorder %s19, %s22
    %p28 = scmp.eq.s32.totalorder %s9, 0
    %p29 = por %p27, %p28
    %p30 = scmp.ne.s32.totalorder %s19, %s22
    %p31 = scmp.eq.s32.totalorder %s14, 1
    %p32 = por %p30, %p31
    %p33 = scmp.ne.s32.totalorder %s22, %s23
    %p34 = scmp.eq.s32.totalorder %s14, 0
    %p35 = por %p33, %p34
    %p36 = scmp.ne.s32.totalorder %s22, %s23
    %p37 = scmp.eq.s32.totalorder %s15, 1
    %p38 = por %p36, %p37
    %p40 = scmp.ne.s32.totalorder %s23, %s39
    %p41 = scmp.eq.s32.totalorder %s15, 0
    %p42 = por %p40, %p41
    %s44 = sadd.s32 %s43, 1
    %p47 = scmp.eq.s32.totalorder %s9, 1
    %p48 = scmp.ne.s32.totalorder %s43, %s45
    %p49 = scmp.eq.s32.totalorder %s9, 0
    %p50 = por %p48, %p49
    %p51 = scmp.ne.s32.totalorder %s43, %s45
    %p52 = scmp.eq.s32.totalorder %s14, 1
    %p53 = por %p51, %p52
    %p54 = scmp.ne.s32.totalorder %s45, %s46
    %p55 = scmp.eq.s32.totalorder %s14, 0
    %p56 = por %p54, %p55
    %p57 = scmp.ne.s32.totalorder %s45, %s46
    %p58 = scmp.eq.s32.totalorder %s15, 1
    %p59 = por %p57, %p58
    %p61 = scmp.ne.s32.totalorder %s46, %s60
    %p62 = scmp.eq.s32.totalorder %s15, 0
    %p63 = por %p61, %p62
    %s65 = sadd.s32 %s64, 1
    %p68 = scmp.eq.s32.totalorder %s9, 1
    %p69 = scmp.ne.s32.totalorder %s64, %s66
    %p70 = scmp.eq.s32.totalorder %s9, 0
    %p71 = por %p69, %p70
    %p72 = scmp.ne.s32.totalorder %s64, %s66
    %p73 = scmp.eq.s32.totalorder %s14, 1
    %p74 = por %p72, %p73
    %p75 = scmp.ne.s32.totalorder %s66, %s67
    %p76 = scmp.eq.s32.totalorder %s14, 0
    %p77 = por %p75, %p76
    %p78 = scmp.ne.s32.totalorder %s66, %s67
    %p79 = scmp.eq.s32.totalorder %s15, 1
    %p80 = por %p78, %p79
    %p82 = scmp.ne.s32.totalorder %s67, %s81
    %p83 = scmp.eq.s32.totalorder %s15, 0
    %p84 = por %p82, %p83
    %s85 = ssub.s32 %s9, %s16
    %p86 = scmp.eq.s32.totalorder %s85, 0
    %s88 = sadd.s32 %s87, 1
    %s89 = scalar_select %p86, %s87, %s88
    %p92 = pneg %p86
    %p93 = scmp.eq.s32.totalorder %s9, 1
    %p94 = por %p92, %p93
    %p95 = scmp.ne.s32.totalorder %s87, %s90
    %p96 = scmp.eq.s32.totalorder %s9, 0
    %p97 = por %p95, %p96
    %p98 = scmp.ne.s32.totalorder %s87, %s90
    %p99 = scmp.eq.s32.totalorder %s14, 1
    %p100 = por %p98, %p99
    %p101 = scmp.ne.s32.totalorder %s90, %s91
    %p102 = scmp.eq.s32.totalorder %s14, 0
    %p103 = por %p101, %p102
    %p104 = scmp.ne.s32.totalorder %s90, %s91
    %p105 = scmp.eq.s32.totalorder %s15, 1
    %p106 = por %p104, %p105
    %p108 = scmp.ne.s32.totalorder %s91, %s107
    %p109 = scmp.eq.s32.totalorder %s15, 0
    %p110 = por %p108, %p109
    %p111 = scmp.le.s32.totalorder 1, %s9
    %p112 = scmp.lt.s32.totalorder %s9, 3
    %p113 = pnand %p111, %p112
    %p114 = pneg %p113
    // Predicated region
    $region9: #{forward.3} parent=5 // pred_check
      _
    $region10: #{forward.3} parent=5 // pred_check_branch
      %116 = sbr.rel (%p113) target = $region12
    $region11: #{forward.3} parent=5 // pred_region
      %s117 = ssub.s32 %s9, 1
      // Predicated region
      $region13: #{forward.3} parent=11 // pred_check
        %p118 = pneg %p56
      $region14: #{forward.3} parent=11 // pred_check_branch
        %120 = sbr.rel (%p118) target = $region16
      $region15: #{forward.3} parent=11 // pred_region
        _
      $region16: #{forward.3} parent=11 // pred_fallthru
        _
      // Predicated region
      $region17: #{forward.3} parent=11 // pred_check
        %p121 = pneg %p77
      $region18: #{forward.3} parent=11 // pred_check_branch
        %123 = sbr.rel (%p121) target = $region20
      $region19: #{forward.3} parent=11 // pred_region
        _
      $region20: #{forward.3} parent=11 // pred_fallthru
        _
    $region12: #{forward.3} parent=5 // pred_fallthru
      _
    %p124 = scmp.lt.s32.totalorder %s9, 2
    // Predicated region
    $region21: #{forward.3} parent=5 // pred_check
      %p125 = pneg %p124
    $region22: #{forward.3} parent=5 // pred_check_branch
      %127 = sbr.rel (%p125) target = $region24
    $region23: #{forward.3} parent=5 // pred_region
      // Predicated region
      $region25: #{forward.3} parent=23 // pred_check
        %p128 = pneg %p29
      $region26: #{forward.3} parent=23 // pred_check_branch
        %130 = sbr.rel (%p128) target = $region28
      $region27: #{forward.3} parent=23 // pred_region
        %s131 = smul.u32 104, %s9
        %p132 = scmp.lt.s32.totalorder %s131, 207
        %s133 = scalar_select %p132, %s131, 207
        %s134 = smul.addr %s133, 4
        %s135 = scalar_lea.vmem %s0, %s134
        %s136 = smul.u32 104, %s9
      $region28: #{forward.3} parent=23 // pred_fallthru
        _
    $region24: #{forward.3} parent=5 // pred_fallthru
      _
    %p137 = scmp.le.s32.totalorder 1, %s9
    %p138 = scmp.lt.s32.totalorder %s9, 3
    %p139 = pnand %p137, %p138
    %p140 = pneg %p139
    // Predicated region
    $region29: #{forward.3} parent=5 // pred_check
      _
    $region30: #{forward.3} parent=5 // pred_check_branch
      %142 = sbr.rel (%p139) target = $region32
    $region31: #{forward.3} parent=5 // pred_region
      %s143 = ssub.s32 %s9, 1
      %s144 = smul.u32 104, %s14
      %p145 = scmp.lt.s32.totalorder %s144, 207
      %s146 = scalar_select %p145, %s144, 207
      %s147 = smul.addr %s146, 4
      %s148 = scalar_lea.vmem %s0, %s147
      %p149 = pneg %p35
      %p150 = pneg %p32
      %p151 = pneg %p56
      %p152 = pneg %p53
      %p153 = pneg %p77
      %p154 = pneg %p74
      %p155 = pneg %p103
      %p156 = pneg %p100
      %s157 = smul.u32 26, %s14
      %p158 = scmp.lt.s32.totalorder %s157, 51
      %s159 = scalar_select %p158, %s157, 51
      %s160 = smul.addr %s159, 4
      %s161 = scalar_lea.vmem %s3, %s160
      %s162 = smul.u32 104, %s14
      %p163 = scmp.lt.s32.totalorder %s162, 207
      %s164 = scalar_select %p163, %s162, 207
      %s165 = smul.addr %s164, 4
      %s166 = scalar_lea.vmem %s0, %s165
      %s167 = smul.u32 104, %s14
      %s168 = smul.u32 26, %s14
      %p169 = scmp.lt.s32.totalorder %s168, 51
      %s170 = scalar_select %p169, %s168, 51
      %s171 = smul.addr %s170, 4
      %s172 = scalar_lea.vmem %s3, %s171
      %s173 = smul.u32 26, %s14
      %v175 = vld [vmem:[%s166] sm:$0xf]
      %v176 = vld [vmem:[%s166 + $0x4] sm:$0xf]
      %v177 = vld [vmem:[%s166 + $0x8] sm:$0xf]
      %v178 = vld [vmem:[%s166 + $0xc] sm:$0xf]
      %v179 = vld [vmem:[%s166 + $0x10] sm:$0xf]
      %v180 = vld [vmem:[%s166 + $0x14] sm:$0xf]
      %v181 = vld [vmem:[%s166 + $0x18] sm:$0xf]
      %v182 = vld [vmem:[%s166 + $0x1c] sm:$0xf]
      %v183 = vld [vmem:[%s166 + $0x20] sm:$0xf]
      %v184 = vld [vmem:[%s166 + $0x24] sm:$0xf]
      %v185 = vld [vmem:[%s166 + $0x28] sm:$0xf]
      %v186 = vld [vmem:[%s166 + $0x2c] sm:$0xf]
      %v187 = vld [vmem:[%s166 + $0x30] sm:$0xf]
      %v188 = vld [vmem:[%s166 + $0x34] sm:$0xf]
      %v189 = vld [vmem:[%s166 + $0x38] sm:$0xf]
      %v190 = vld [vmem:[%s166 + $0x3c] sm:$0xf]
      %v191 = vld [vmem:[%s166 + $0x40] sm:$0xf]
      %v192 = vld [vmem:[%s166 + $0x44] sm:$0xf]
      %v193 = vld [vmem:[%s166 + $0x48] sm:$0xf]
      %v194 = vld [vmem:[%s166 + $0x4c] sm:$0xf]
      %v195 = vld [vmem:[%s166 + $0x50] sm:$0xf]
      %v196 = vld [vmem:[%s166 + $0x54] sm:$0xf]
      %v197 = vld [vmem:[%s166 + $0x58] sm:$0xf]
      %v198 = vld [vmem:[%s166 + $0x5c] sm:$0xf]
      %v199 = vld [vmem:[%s166 + $0x60] sm:$0xf]
      %v200 = vld [vmem:[%s166 + $0x64] sm:$0xf]
      %v201 = vld [vmem:[%s166 + $0x68] sm:$0xf]
      %v202 = vld [vmem:[%s166 + $0x6c] sm:$0xf]
      %v203 = vld [vmem:[%s166 + $0x70] sm:$0xf]
      %v204 = vld [vmem:[%s166 + $0x74] sm:$0xf]
      %v205 = vld [vmem:[%s166 + $0x78] sm:$0xf]
      %v206 = vld [vmem:[%s166 + $0x7c] sm:$0xf]
      %v207 = vld [vmem:[%s166 + $0x80] sm:$0xf]
      %v208 = vld [vmem:[%s166 + $0x84] sm:$0xf]
      %v209 = vld [vmem:[%s166 + $0x88] sm:$0xf]
      %v210 = vld [vmem:[%s166 + $0x8c] sm:$0xf]
      %v211 = vld [vmem:[%s166 + $0x90] sm:$0xf]
      %v212 = vld [vmem:[%s166 + $0x94] sm:$0xf]
      %v213 = vld [vmem:[%s166 + $0x98] sm:$0xf]
      %v214 = vld [vmem:[%s166 + $0x9c] sm:$0xf]
      %v215 = vld [vmem:[%s166 + $0xa0] sm:$0xf]
      %v216 = vld [vmem:[%s166 + $0xa4] sm:$0xf]
      %v217 = vld [vmem:[%s166 + $0xa8] sm:$0xf]
      %v218 = vld [vmem:[%s166 + $0xac] sm:$0xf]
      %v219 = vld [vmem:[%s166 + $0xb0] sm:$0xf]
      %v220 = vld [vmem:[%s166 + $0xb4] sm:$0xf]
      %v221 = vld [vmem:[%s166 + $0xb8] sm:$0xf]
      %v222 = vld [vmem:[%s166 + $0xbc] sm:$0xf]
      %v223 = vld [vmem:[%s166 + $0xc0] sm:$0xf]
      %v224 = vld [vmem:[%s166 + $0xc4] sm:$0xf]
      %v225 = vld [vmem:[%s166 + $0xc8] sm:$0xf]
      %v226 = vld [vmem:[%s166 + $0xcc] sm:$0xf]
      %v227 = vld [vmem:[%s166 + $0xd0] sm:$0xf]
      %v228 = vld [vmem:[%s166 + $0xd4] sm:$0xf]
      %v229 = vld [vmem:[%s166 + $0xd8] sm:$0xf]
      %v230 = vld [vmem:[%s166 + $0xdc] sm:$0xf]
      %v231 = vld [vmem:[%s166 + $0xe0] sm:$0xf]
      %v232 = vld [vmem:[%s166 + $0xe4] sm:$0xf]
      %v233 = vld [vmem:[%s166 + $0xe8] sm:$0xf]
      %v234 = vld [vmem:[%s166 + $0xec] sm:$0xf]
      %v235 = vld [vmem:[%s166 + $0xf0] sm:$0xf]
      %v236 = vld [vmem:[%s166 + $0xf4] sm:$0xf]
      %v237 = vld [vmem:[%s166 + $0xf8] sm:$0xf]
      %v238 = vld [vmem:[%s166 + $0xfc] sm:$0xf]
      %v239 = vld [vmem:[%s166 + $0x100] sm:$0xf]
      %v240 = vld [vmem:[%s166 + $0x104] sm:$0xf]
      %v241 = vld [vmem:[%s166 + $0x108] sm:$0xf]
      %v242 = vld [vmem:[%s166 + $0x10c] sm:$0xf]
      %v243 = vld [vmem:[%s166 + $0x110] sm:$0xf]
      %v244 = vld [vmem:[%s166 + $0x114] sm:$0xf]
      %v245 = vld [vmem:[%s166 + $0x118] sm:$0xf]
      %v246 = vld [vmem:[%s166 + $0x11c] sm:$0xf]
      %v247 = vld [vmem:[%s166 + $0x120] sm:$0xf]
      %v248 = vld [vmem:[%s166 + $0x124] sm:$0xf]
      %v249 = vld [vmem:[%s166 + $0x128] sm:$0xf]
      %v250 = vld [vmem:[%s166 + $0x12c] sm:$0xf]
      %v251 = vld [vmem:[%s166 + $0x130] sm:$0xf]
      %v252 = vld [vmem:[%s166 + $0x134] sm:$0xf]
      %v253 = vld [vmem:[%s166 + $0x138] sm:$0xf]
      %v254 = vld [vmem:[%s166 + $0x13c] sm:$0xf]
      %v255 = vld [vmem:[%s166 + $0x140] sm:$0xf]
      %v256 = vld [vmem:[%s166 + $0x144] sm:$0xf]
      %v257 = vld [vmem:[%s166 + $0x148] sm:$0xf]
      %v258 = vld [vmem:[%s166 + $0x14c] sm:$0xf]
      %v259 = vld [vmem:[%s166 + $0x150] sm:$0xf]
      %v260 = vld [vmem:[%s166 + $0x154] sm:$0xf]
      %v261 = vld [vmem:[%s166 + $0x158] sm:$0xf]
      %v262 = vld [vmem:[%s166 + $0x15c] sm:$0xf]
      %v263 = vld [vmem:[%s166 + $0x160] sm:$0xf]
      %v264 = vld [vmem:[%s166 + $0x164] sm:$0xf]
      %v265 = vld [vmem:[%s166 + $0x168] sm:$0xf]
      %v266 = vld [vmem:[%s166 + $0x16c] sm:$0xf]
      %v267 = vld [vmem:[%s166 + $0x170] sm:$0xf]
      %v268 = vld [vmem:[%s166 + $0x174] sm:$0xf]
      %v269 = vld [vmem:[%s166 + $0x178] sm:$0xf]
      %v270 = vld [vmem:[%s166 + $0x17c] sm:$0xf]
      %v271 = vld [vmem:[%s166 + $0x180] sm:$0xf]
      %v272 = vld [vmem:[%s166 + $0x184] sm:$0xf]
      %v273 = vld [vmem:[%s166 + $0x188] sm:$0xf]
      %v274 = vld [vmem:[%s166 + $0x18c] sm:$0xf]
      %v275 = vld [vmem:[%s166 + $0x190] sm:$0xf]
      %v276 = vld [vmem:[%s166 + $0x194] sm:$0xf]
      %v277 = vld [vmem:[%s166 + $0x198] sm:$0xf]
      %v278 = vld [vmem:[%s166 + $0x19c] sm:$0xf]
      %v279 = vld [vmem:[%s1] sm:$0xf]
      %v280 = vld [vmem:[%s1 + $0x4] sm:$0xf]
      %v281 = vld [vmem:[%s1 + $0x8] sm:$0xf]
      %v282 = vld [vmem:[%s1 + $0xc] sm:$0xf]
      %v283 = vld [vmem:[%s1 + $0x10] sm:$0xf]
      %v284 = vld [vmem:[%s1 + $0x14] sm:$0xf]
      %v285 = vld [vmem:[%s1 + $0x18] sm:$0xf]
      %v286 = vld [vmem:[%s1 + $0x1c] sm:$0xf]
      %v287 = vld [vmem:[%s1 + $0x20] sm:$0xf]
      %v288 = vld [vmem:[%s1 + $0x24] sm:$0xf]
      %v289 = vld [vmem:[%s1 + $0x28] sm:$0xf]
      %v290 = vld [vmem:[%s1 + $0x2c] sm:$0xf]
      %v291 = vld [vmem:[%s1 + $0x30] sm:$0xf]
      %v292 = vld [vmem:[%s1 + $0x34] sm:$0xf]
      %v293 = vld [vmem:[%s1 + $0x38] sm:$0xf]
      %v294 = vld [vmem:[%s1 + $0x3c] sm:$0xf]
      %v399 = vunpack.c.l.b16 %v175
      %v400 = vunpack.c.l.b16 %v176
      %v401 = vunpack.c.l.b16 %v177
      %v402 = vunpack.c.l.b16 %v178
      %v403 = vunpack.c.l.b16 %v179
      %v404 = vunpack.c.l.b16 %v180
      %v405 = vunpack.c.l.b16 %v181
      %v406 = vunpack.c.l.b16 %v182
      %v407 = vunpack.c.l.b16 %v183
      %v408 = vunpack.c.l.b16 %v184
      %v409 = vunpack.c.l.b16 %v185
      %v410 = vunpack.c.l.b16 %v186
      %v411 = vunpack.c.l.b16 %v187
      %v412 = vunpack.c.l.b16 %v188
      %v413 = vunpack.c.l.b16 %v189
      %v414 = vunpack.c.l.b16 %v190
      %v415 = vunpack.c.l.b16 %v191
      %v416 = vunpack.c.l.b16 %v192
      %v417 = vunpack.c.l.b16 %v193
      %v418 = vunpack.c.l.b16 %v194
      %v419 = vunpack.c.l.b16 %v195
      %v420 = vunpack.c.l.b16 %v196
      %v421 = vunpack.c.l.b16 %v197
      %v422 = vunpack.c.l.b16 %v198
      %v423 = vunpack.c.l.b16 %v199
      %v424 = vunpack.c.l.b16 %v200
      %v425 = vunpack.c.l.b16 %v201
      %v426 = vunpack.c.l.b16 %v202
      %v427 = vunpack.c.l.b16 %v203
      %v428 = vunpack.c.l.b16 %v204
      %v429 = vunpack.c.l.b16 %v205
      %v430 = vunpack.c.l.b16 %v206
      %v431 = vunpack.c.l.b16 %v207
      %v432 = vunpack.c.l.b16 %v208
      %v433 = vunpack.c.l.b16 %v209
      %v434 = vunpack.c.l.b16 %v210
      %v435 = vunpack.c.l.b16 %v211
      %v436 = vunpack.c.l.b16 %v212
      %v437 = vunpack.c.l.b16 %v213
      %v438 = vunpack.c.l.b16 %v214
      %v439 = vunpack.c.l.b16 %v215
      %v440 = vunpack.c.l.b16 %v216
      %v441 = vunpack.c.l.b16 %v217
      %v442 = vunpack.c.l.b16 %v218
      %v443 = vunpack.c.l.b16 %v219
      %v444 = vunpack.c.l.b16 %v220
      %v445 = vunpack.c.l.b16 %v221
      %v446 = vunpack.c.l.b16 %v222
      %v447 = vunpack.c.l.b16 %v223
      %v448 = vunpack.c.l.b16 %v224
      %v449 = vunpack.c.l.b16 %v225
      %v450 = vunpack.c.l.b16 %v226
      %v451 = vunpack.c.l.b16 %v227
      %v452 = vunpack.c.l.b16 %v228
      %v453 = vunpack.c.l.b16 %v229
      %v454 = vunpack.c.l.b16 %v230
      %v455 = vunpack.c.l.b16 %v231
      %v456 = vunpack.c.l.b16 %v232
      %v457 = vunpack.c.l.b16 %v233
      %v458 = vunpack.c.l.b16 %v234
      %v459 = vunpack.c.l.b16 %v235
      %v460 = vunpack.c.l.b16 %v236
      %v461 = vunpack.c.l.b16 %v237
      %v462 = vunpack.c.l.b16 %v238
      %v463 = vunpack.c.l.b16 %v239
      %v464 = vunpack.c.l.b16 %v240
      %v465 = vunpack.c.l.b16 %v241
      %v466 = vunpack.c.l.b16 %v242
      %v467 = vunpack.c.l.b16 %v243
      %v468 = vunpack.c.l.b16 %v244
      %v469 = vunpack.c.l.b16 %v245
      %v470 = vunpack.c.l.b16 %v246
      %v471 = vunpack.c.l.b16 %v247
      %v472 = vunpack.c.l.b16 %v248
      %v473 = vunpack.c.l.b16 %v249
      %v474 = vunpack.c.l.b16 %v250
      %v475 = vunpack.c.l.b16 %v251
      %v476 = vunpack.c.l.b16 %v252
      %v477 = vunpack.c.l.b16 %v253
      %v478 = vunpack.c.l.b16 %v254
      %v479 = vunpack.c.l.b16 %v255
      %v480 = vunpack.c.l.b16 %v256
      %v481 = vunpack.c.l.b16 %v257
      %v482 = vunpack.c.l.b16 %v258
      %v483 = vunpack.c.l.b16 %v259
      %v484 = vunpack.c.l.b16 %v260
      %v485 = vunpack.c.l.b16 %v261
      %v486 = vunpack.c.l.b16 %v262
      %v487 = vunpack.c.l.b16 %v263
      %v488 = vunpack.c.l.b16 %v264
      %v489 = vunpack.c.l.b16 %v265
      %v490 = vunpack.c.l.b16 %v266
      %v491 = vunpack.c.l.b16 %v267
      %v492 = vunpack.c.l.b16 %v268
      %v493 = vunpack.c.l.b16 %v269
      %v494 = vunpack.c.l.b16 %v270
      %v495 = vunpack.c.l.b16 %v271
      %v496 = vunpack.c.l.b16 %v272
      %v497 = vunpack.c.l.b16 %v273
      %v498 = vunpack.c.l.b16 %v274
      %v499 = vunpack.c.l.b16 %v275
      %v500 = vunpack.c.l.b16 %v276
      %v501 = vunpack.c.l.b16 %v277
      %v502 = vunpack.c.l.b16 %v278
      %v503 = vpack.c.b16 %v400, %v399
      %v504 = vpack.c.b16 %v402, %v401
      %v505 = vpack.c.b16 %v404, %v403
      %v506 = vpack.c.b16 %v406, %v405
      %v507 = vpack.c.b16 %v408, %v407
      %v508 = vpack.c.b16 %v410, %v409
      %v509 = vpack.c.b16 %v412, %v411
      %v510 = vpack.c.b16 %v414, %v413
      %v511 = vpack.c.b16 %v416, %v415
      %v512 = vpack.c.b16 %v418, %v417
      %v513 = vpack.c.b16 %v420, %v419
      %v514 = vpack.c.b16 %v422, %v421
      %v515 = vpack.c.b16 %v424, %v423
      %v516 = vpack.c.b16 %v426, %v425
      %v517 = vpack.c.b16 %v428, %v427
      %v518 = vpack.c.b16 %v430, %v429
      %v519 = vpack.c.b16 %v432, %v431
      %v520 = vpack.c.b16 %v434, %v433
      %v521 = vpack.c.b16 %v436, %v435
      %v522 = vpack.c.b16 %v438, %v437
      %v523 = vpack.c.b16 %v440, %v439
      %v524 = vpack.c.b16 %v442, %v441
      %v525 = vpack.c.b16 %v444, %v443
      %v526 = vpack.c.b16 %v446, %v445
      %v527 = vpack.c.b16 %v448, %v447
      %v528 = vpack.c.b16 %v450, %v449
      %v529 = vpack.c.b16 %v452, %v451
      %v530 = vpack.c.b16 %v454, %v453
      %v531 = vpack.c.b16 %v456, %v455
      %v532 = vpack.c.b16 %v458, %v457
      %v533 = vpack.c.b16 %v460, %v459
      %v534 = vpack.c.b16 %v462, %v461
      %v535 = vpack.c.b16 %v464, %v463
      %v536 = vpack.c.b16 %v466, %v465
      %v537 = vpack.c.b16 %v468, %v467
      %v538 = vpack.c.b16 %v470, %v469
      %v539 = vpack.c.b16 %v472, %v471
      %v540 = vpack.c.b16 %v474, %v473
      %v541 = vpack.c.b16 %v476, %v475
      %v542 = vpack.c.b16 %v478, %v477
      %v543 = vpack.c.b16 %v480, %v479
      %v544 = vpack.c.b16 %v482, %v481
      %v545 = vpack.c.b16 %v484, %v483
      %v546 = vpack.c.b16 %v486, %v485
      %v547 = vpack.c.b16 %v488, %v487
      %v548 = vpack.c.b16 %v490, %v489
      %v549 = vpack.c.b16 %v492, %v491
      %v550 = vpack.c.b16 %v494, %v493
      %v551 = vpack.c.b16 %v496, %v495
      %v552 = vpack.c.b16 %v498, %v497
      %v553 = vpack.c.b16 %v500, %v499
      %v554 = vpack.c.b16 %v502, %v501
      %v623 = vunpack.c.l.b16 %v279
      %v624 = vunpack.c.l.b16 %v280
      %v625 = vunpack.c.l.b16 %v281
      %v626 = vunpack.c.l.b16 %v282
      %v627 = vunpack.c.l.b16 %v283
      %v628 = vunpack.c.l.b16 %v284
      %v629 = vunpack.c.l.b16 %v285
      %v630 = vunpack.c.l.b16 %v286
      %v631 = vunpack.c.l.b16 %v287
      %v632 = vunpack.c.l.b16 %v288
      %v633 = vunpack.c.l.b16 %v289
      %v634 = vunpack.c.l.b16 %v290
      %v635 = vunpack.c.l.b16 %v291
      %v636 = vunpack.c.l.b16 %v292
      %v637 = vunpack.c.l.b16 %v293
      %v638 = vunpack.c.l.b16 %v294
      %v639 = vpack.c.b16 %v624, %v623
      %v640 = vpack.c.b16 %v626, %v625
      %v641 = vpack.c.b16 %v628, %v627
      %v642 = vpack.c.b16 %v630, %v629
      %v643 = vpack.c.b16 %v632, %v631
      %v644 = vpack.c.b16 %v634, %v633
      %v645 = vpack.c.b16 %v636, %v635
      %v646 = vpack.c.b16 %v638, %v637
      %655 = vmatprep.subr.bf16.mxu0 0
      %656 = vmatpush1.bf16.msra.mxu0 %v639
      %657 = vmatprep.subr.bf16.mxu0 0
      %658 = vmatpush1.bf16.msra.mxu0 %v640
      %659 = vmatprep.subr.bf16.mxu0 0
      %660 = vmatpush1.bf16.msra.mxu0 %v641
      %661 = vmatprep.subr.bf16.mxu0 0
      %662 = vmatpush1.bf16.msra.mxu0 %v642
      %663 = vmatprep.subr.bf16.mxu0 0
      %664 = vmatpush1.bf16.msra.mxu0 %v643
      %665 = vmatprep.subr.bf16.mxu0 0
      %666 = vmatpush1.bf16.msra.mxu0 %v644
      %667 = vmatprep.subr.bf16.mxu0 0
      %668 = vmatpush1.bf16.msra.mxu0 %v645
      %669 = vmatprep.subr.bf16.mxu0 0
      %670 = vmatpush1.bf16.msra.mxu0 %v646
      %671 = vmatprep.subr.bf16.mxu0 0
      %672 = vmatpush1.bf16.msra.mxu0 0
      %673 = vmatprep.subr.bf16.mxu0 0
      %674 = vmatpush1.bf16.msra.mxu0 0
      %675 = vmatprep.subr.bf16.mxu0 0
      %676 = vmatpush1.bf16.msra.mxu0 0
      %677 = vmatprep.subr.bf16.mxu0 0
      %678 = vmatpush1.bf16.msra.mxu0 0
      %679 = vmatprep.subr.bf16.mxu0 0
      %680 = vmatpush1.bf16.msra.mxu0 0
      %681 = vmatprep.subr.bf16.mxu0 0
      %682 = vmatpush1.bf16.msra.mxu0 0
      %683 = vmatprep.subr.bf16.mxu0 0
      %684 = vmatpush1.bf16.msra.mxu0 0
      %685 = vmatprep.subr.bf16.mxu0 0
      %686 = vmatpush1.bf16.msra.mxu0 0
      %687 = vmatprep.mubr.bf16.mxu0 0
      %688 = vmatmul.mubr.bf16.gmra.mrb[0].mxu0 %v503
      %v689 = vpop.f32.mrb[0].mxu0
      %v690 = vadd.f32 0.0, %v689
      %v691 = vpop.f32.mrb[0].mxu0
      %v692 = vpop.f32.mrb[0].mxu0
      %v693 = vadd.f32 0.0, %v692
      %v694 = vpop.f32.mrb[0].mxu0
      %695 = vmatprep.mubr.bf16.mxu0 0
      %696 = vmatmul.mubr.bf16.gmra.mrb[0].mxu0 %v504
      %v697 = vpop.f32.mrb[0].mxu0
      %v698 = vadd.f32 0.0, %v697
      %v699 = vpop.f32.mrb[0].mxu0
      %v700 = vpop.f32.mrb[0].mxu0
      %v701 = vadd.f32 0.0, %v700
      %v702 = vpop.f32.mrb[0].mxu0
      %703 = vmatprep.mubr.bf16.mxu0 0
      %704 = vmatmul.mubr.bf16.gmra.mrb[0].mxu0 %v505
      %v705 = vpop.f32.mrb[0].mxu0
      %v706 = vadd.f32 0.0, %v705
      %v707 = vpop.f32.mrb[0].mxu0
      %v708 = vpop.f32.mrb[0].mxu0
      %v709 = vadd.f32 0.0, %v708
      %v710 = vpop.f32.mrb[0].mxu0
      %711 = vmatprep.mubr.bf16.mxu0 0
      %712 = vmatmul.mubr.bf16.gmra.mrb[0].mxu0 %v506
      %v713 = vpop.f32.mrb[0].mxu0
      %v714 = vadd.f32 0.0, %v713
      %v715 = vpop.f32.mrb[0].mxu0
      %v716 = vpop.f32.mrb[0].mxu0
      %v717 = vadd.f32 0.0, %v716
      %v718 = vpop.f32.mrb[0].mxu0
      %719 = vmatprep.mubr.bf16.mxu0 0
      %720 = vmatmul.mubr.bf16.gmra.mrb[0].mxu0 %v507
      %v721 = vpop.f32.mrb[0].mxu0
      %v722 = vadd.f32 0.0, %v721
      %v723 = vpop.f32.mrb[0].mxu0
      %v724 = vpop.f32.mrb[0].mxu0
      %v725 = vadd.f32 0.0, %v724
      %v726 = vpop.f32.mrb[0].mxu0
      %727 = vmatprep.mubr.bf16.mxu0 0
      %728 = vmatmul.mubr.bf16.gmra.mrb[0].mxu0 %v508
      %v729 = vpop.f32.mrb[0].mxu0
      %v730 = vadd.f32 0.0, %v729
      %v731 = vpop.f32.mrb[0].mxu0
      %v732 = vpop.f32.mrb[0].mxu0
      %v733 = vadd.f32 0.0, %v732
      %v734 = vpop.f32.mrb[0].mxu0
      %735 = vmatprep.mubr.bf16.mxu0 0
      %736 = vmatmul.mubr.bf16.gmra.mrb[0].mxu0 %v509
      %v737 = vpop.f32.mrb[0].mxu0
      %v738 = vadd.f32 0.0, %v737
      %v739 = vpop.f32.mrb[0].mxu0
      %v740 = vpop.f32.mrb[0].mxu0
      %v741 = vadd.f32 0.0, %v740
      %v742 = vpop.f32.mrb[0].mxu0
      %743 = vmatprep.mubr.bf16.mxu0 0
      %744 = vmatmul.mubr.bf16.gmra.mrb[0].mxu0 %v510
      %v745 = vpop.f32.mrb[0].mxu0
      %v746 = vadd.f32 0.0, %v745
      %v747 = vpop.f32.mrb[0].mxu0
      %v748 = vpop.f32.mrb[0].mxu0
      %v749 = vadd.f32 0.0, %v748
      %v750 = vpop.f32.mrb[0].mxu0
      %751 = vmatprep.mubr.bf16.mxu0 0
      %752 = vmatmul.mubr.bf16.gmra.mrb[0].mxu0 %v511
      %v753 = vpop.f32.mrb[0].mxu0
      %v754 = vadd.f32 0.0, %v753
      %v755 = vpop.f32.mrb[0].mxu0
      %v756 = vpop.f32.mrb[0].mxu0
      %v757 = vadd.f32 0.0, %v756
      %v758 = vpop.f32.mrb[0].mxu0
      %759 = vmatprep.mubr.bf16.mxu0 0
      %760 = vmatmul.mubr.bf16.gmra.mrb[0].mxu0 %v512
      %v761 = vpop.f32.mrb[0].mxu0
      %v762 = vadd.f32 0.0, %v761
      %v763 = vpop.f32.mrb[0].mxu0
      %v764 = vpop.f32.mrb[0].mxu0
      %v765 = vadd.f32 0.0, %v764
      %v766 = vpop.f32.mrb[0].mxu0
      %767 = vmatprep.mubr.bf16.mxu0 0
      %768 = vmatmul.mubr.bf16.gmra.mrb[0].mxu0 %v513
      %v769 = vpop.f32.mrb[0].mxu0
      %v770 = vadd.f32 0.0, %v769
      %v771 = vpop.f32.mrb[0].mxu0
      %v772 = vpop.f32.mrb[0].mxu0
      %v773 = vadd.f32 0.0, %v772
      %v774 = vpop.f32.mrb[0].mxu0
      %775 = vmatprep.mubr.bf16.mxu0 0
      %776 = vmatmul.mubr.bf16.gmra.mrb[0].mxu0 %v514
      %v777 = vpop.f32.mrb[0].mxu0
      %v778 = vadd.f32 0.0, %v777
      %v779 = vpop.f32.mrb[0].mxu0
      %v780 = vpop.f32.mrb[0].mxu0
      %v781 = vadd.f32 0.0, %v780
      %v782 = vpop.f32.mrb[0].mxu0
      %783 = vmatprep.mubr.bf16.mxu0 0
      %784 = vmatmul.mubr.bf16.gmra.mrb[0].mxu0 %v515
      %v785 = vpop.f32.mrb[0].mxu0
      %v786 = vadd.f32 0.0, %v785
      %v787 = vpop.f32.mrb[0].mxu0
      %v788 = vpop.f32.mrb[0].mxu0
      %v789 = vadd.f32 0.0, %v788
      %v790 = vpop.f32.mrb[0].mxu0
      %791 = vmatprep.mubr.bf16.mxu0 0
      %792 = vmatmul.mubr.bf16.gmra.mrb[0].mxu0 %v516
      %v793 = vpop.f32.mrb[0].mxu0
      %v794 = vadd.f32 0.0, %v793
      %v795 = vpop.f32.mrb[0].mxu0
      %v796 = vpop.f32.mrb[0].mxu0
      %v797 = vadd.f32 0.0, %v796
      %v798 = vpop.f32.mrb[0].mxu0
      %799 = vmatprep.mubr.bf16.mxu0 0
      %800 = vmatmul.mubr.bf16.gmra.mrb[0].mxu0 %v517
      %v801 = vpop.f32.mrb[0].mxu0
      %v802 = vadd.f32 0.0, %v801
      %v803 = vpop.f32.mrb[0].mxu0
      %v804 = vpop.f32.mrb[0].mxu0
      %v805 = vadd.f32 0.0, %v804
      %v806 = vpop.f32.mrb[0].mxu0
      %807 = vmatprep.mubr.bf16.mxu0 0
      %808 = vmatmul.mubr.bf16.gmra.mrb[0].mxu0 %v518
      %v809 = vpop.f32.mrb[0].mxu0
      %v810 = vadd.f32 0.0, %v809
      %v811 = vpop.f32.mrb[0].mxu0
      %v812 = vpop.f32.mrb[0].mxu0
      %v813 = vadd.f32 0.0, %v812
      %v814 = vpop.f32.mrb[0].mxu0
      %815 = vmatprep.mubr.bf16.mxu0 0
      %816 = vmatmul.mubr.bf16.gmra.mrb[0].mxu0 %v519
      %v817 = vpop.f32.mrb[0].mxu0
      %v818 = vadd.f32 0.0, %v817
      %v819 = vpop.f32.mrb[0].mxu0
      %v820 = vpop.f32.mrb[0].mxu0
      %v821 = vadd.f32 0.0, %v820
      %v822 = vpop.f32.mrb[0].mxu0
      %823 = vmatprep.mubr.bf16.mxu0 0
      %824 = vmatmul.mubr.bf16.gmra.mrb[0].mxu0 %v520
      %v825 = vpop.f32.mrb[0].mxu0
      %v826 = vadd.f32 0.0, %v825
      %v827 = vpop.f32.mrb[0].mxu0
      %v828 = vpop.f32.mrb[0].mxu0
      %v829 = vadd.f32 0.0, %v828
      %v830 = vpop.f32.mrb[0].mxu0
      %831 = vmatprep.mubr.bf16.mxu0 0
      %832 = vmatmul.mubr.bf16.gmra.mrb[0].mxu0 %v521
      %v833 = vpop.f32.mrb[0].mxu0
      %v834 = vadd.f32 0.0, %v833
      %v835 = vpop.f32.mrb[0].mxu0
      %v836 = vpop.f32.mrb[0].mxu0
      %v837 = vadd.f32 0.0, %v836
      %v838 = vpop.f32.mrb[0].mxu0
      %839 = vmatprep.mubr.bf16.mxu0 0
      %840 = vmatmul.mubr.bf16.gmra.mrb[0].mxu0 %v522
      %v841 = vpop.f32.mrb[0].mxu0
      %v842 = vadd.f32 0.0, %v841
      %v843 = vpop.f32.mrb[0].mxu0
      %v844 = vpop.f32.mrb[0].mxu0
      %v845 = vadd.f32 0.0, %v844
      %v846 = vpop.f32.mrb[0].mxu0
      %847 = vmatprep.mubr.bf16.mxu0 0
      %848 = vmatmul.mubr.bf16.gmra.mrb[0].mxu0 %v523
      %v849 = vpop.f32.mrb[0].mxu0
      %v850 = vadd.f32 0.0, %v849
      %v851 = vpop.f32.mrb[0].mxu0
      %v852 = vpop.f32.mrb[0].mxu0
      %v853 = vadd.f32 0.0, %v852
      %v854 = vpop.f32.mrb[0].mxu0
      %855 = vmatprep.mubr.bf16.mxu0 0
      %856 = vmatmul.mubr.bf16.gmra.mrb[0].mxu0 %v524
      %v857 = vpop.f32.mrb[0].mxu0
      %v858 = vadd.f32 0.0, %v857
      %v859 = vpop.f32.mrb[0].mxu0
      %v860 = vpop.f32.mrb[0].mxu0
      %v861 = vadd.f32 0.0, %v860
      %v862 = vpop.f32.mrb[0].mxu0
      %863 = vmatprep.mubr.bf16.mxu0 0
      %864 = vmatmul.mubr.bf16.gmra.mrb[0].mxu0 %v525
      %v865 = vpop.f32.mrb[0].mxu0
      %v866 = vadd.f32 0.0, %v865
      %v867 = vpop.f32.mrb[0].mxu0
      %v868 = vpop.f32.mrb[0].mxu0
      %v869 = vadd.f32 0.0, %v868
      %v870 = vpop.f32.mrb[0].mxu0
      %871 = vmatprep.mubr.bf16.mxu0 0
      %872 = vmatmul.mubr.bf16.gmra.mrb[0].mxu0 %v526
      %v873 = vpop.f32.mrb[0].mxu0
      %v874 = vadd.f32 0.0, %v873
      %v875 = vpop.f32.mrb[0].mxu0
      %v876 = vpop.f32.mrb[0].mxu0
      %v877 = vadd.f32 0.0, %v876
      %v878 = vpop.f32.mrb[0].mxu0
      %879 = vmatprep.mubr.bf16.mxu0 0
      %880 = vmatmul.mubr.bf16.gmra.mrb[0].mxu0 %v527
      %v881 = vpop.f32.mrb[0].mxu0
      %v882 = vadd.f32 0.0, %v881
      %v883 = vpop.f32.mrb[0].mxu0
      %v884 = vpop.f32.mrb[0].mxu0
      %v885 = vadd.f32 0.0, %v884
      %v886 = vpop.f32.mrb[0].mxu0
      %887 = vmatprep.mubr.bf16.mxu0 0
      %888 = vmatmul.mubr.bf16.gmra.mrb[0].mxu0 %v528
      %v889 = vpop.f32.mrb[0].mxu0
      %v890 = vadd.f32 0.0, %v889
      %v891 = vpop.f32.mrb[0].mxu0
      %v892 = vpop.f32.mrb[0].mxu0
      %v893 = vadd.f32 0.0, %v892
      %v894 = vpop.f32.mrb[0].mxu0
      %895 = vmatprep.mubr.bf16.mxu0 0
      %896 = vmatmul.mubr.bf16.gmra.mrb[0].mxu0 %v529
      %v897 = vpop.f32.mrb[0].mxu0
      %v898 = vadd.f32 0.0, %v897
      %v899 = vpop.f32.mrb[0].mxu0
      %v900 = vpop.f32.mrb[0].mxu0
      %v901 = vadd.f32 0.0, %v900
      %v902 = vpop.f32.mrb[0].mxu0
      %903 = vmatprep.mubr.bf16.mxu0 0
      %904 = vmatmul.mubr.bf16.gmra.mrb[0].mxu0 %v530
      %v905 = vpop.f32.mrb[0].mxu0
      %v906 = vadd.f32 0.0, %v905
      %v907 = vpop.f32.mrb[0].mxu0
      %v908 = vpop.f32.mrb[0].mxu0
      %v909 = vadd.f32 0.0, %v908
      %v910 = vpop.f32.mrb[0].mxu0
      %911 = vmatprep.mubr.bf16.mxu0 0
      %912 = vmatmul.mubr.bf16.gmra.mrb[0].mxu0 %v531
      %v913 = vpop.f32.mrb[0].mxu0
      %v914 = vadd.f32 0.0, %v913
      %v915 = vpop.f32.mrb[0].mxu0
      %v916 = vpop.f32.mrb[0].mxu0
      %v917 = vadd.f32 0.0, %v916
      %v918 = vpop.f32.mrb[0].mxu0
      %919 = vmatprep.mubr.bf16.mxu0 0
      %920 = vmatmul.mubr.bf16.gmra.mrb[0].mxu0 %v532
      %v921 = vpop.f32.mrb[0].mxu0
      %v922 = vadd.f32 0.0, %v921
      %v923 = vpop.f32.mrb[0].mxu0
      %v924 = vpop.f32.mrb[0].mxu0
      %v925 = vadd.f32 0.0, %v924
      %v926 = vpop.f32.mrb[0].mxu0
      %927 = vmatprep.mubr.bf16.mxu0 0
      %928 = vmatmul.mubr.bf16.gmra.mrb[0].mxu0 %v533
      %v929 = vpop.f32.mrb[0].mxu0
      %v930 = vadd.f32 0.0, %v929
      %v931 = vpop.f32.mrb[0].mxu0
      %v932 = vpop.f32.mrb[0].mxu0
      %v933 = vadd.f32 0.0, %v932
      %v934 = vpop.f32.mrb[0].mxu0
      %935 = vmatprep.mubr.bf16.mxu0 0
      %936 = vmatmul.mubr.bf16.gmra.mrb[0].mxu0 %v534
      %v937 = vpop.f32.mrb[0].mxu0
      %v938 = vadd.f32 0.0, %v937
      %v939 = vpop.f32.mrb[0].mxu0
      %v940 = vpop.f32.mrb[0].mxu0
      %v941 = vadd.f32 0.0, %v940
      %v942 = vpop.f32.mrb[0].mxu0
      %943 = vmatprep.mubr.bf16.mxu0 0
      %944 = vmatmul.mubr.bf16.gmra.mrb[0].mxu0 %v535
      %v945 = vpop.f32.mrb[0].mxu0
      %v946 = vadd.f32 0.0, %v945
      %v947 = vpop.f32.mrb[0].mxu0
      %v948 = vpop.f32.mrb[0].mxu0
      %v949 = vadd.f32 0.0, %v948
      %v950 = vpop.f32.mrb[0].mxu0
      %951 = vmatprep.mubr.bf16.mxu0 0
      %952 = vmatmul.mubr.bf16.gmra.mrb[0].mxu0 %v536
      %v953 = vpop.f32.mrb[0].mxu0
      %v954 = vadd.f32 0.0, %v953
      %v955 = vpop.f32.mrb[0].mxu0
      %v956 = vpop.f32.mrb[0].mxu0
      %v957 = vadd.f32 0.0, %v956
      %v958 = vpop.f32.mrb[0].mxu0
      %959 = vmatprep.mubr.bf16.mxu0 0
      %960 = vmatmul.mubr.bf16.gmra.mrb[0].mxu0 %v537
      %v961 = vpop.f32.mrb[0].mxu0
      %v962 = vadd.f32 0.0, %v961
      %v963 = vpop.f32.mrb[0].mxu0
      %v964 = vpop.f32.mrb[0].mxu0
      %v965 = vadd.f32 0.0, %v964
      %v966 = vpop.f32.mrb[0].mxu0
      %967 = vmatprep.mubr.bf16.mxu0 0
      %968 = vmatmul.mubr.bf16.gmra.mrb[0].mxu0 %v538
      %v969 = vpop.f32.mrb[0].mxu0
      %v970 = vadd.f32 0.0, %v969
      %v971 = vpop.f32.mrb[0].mxu0
      %v972 = vpop.f32.mrb[0].mxu0
      %v973 = vadd.f32 0.0, %v972
      %v974 = vpop.f32.mrb[0].mxu0
      %975 = vmatprep.mubr.bf16.mxu0 0
      %976 = vmatmul.mubr.bf16.gmra.mrb[0].mxu0 %v539
      %v977 = vpop.f32.mrb[0].mxu0
      %v978 = vadd.f32 0.0, %v977
      %v979 = vpop.f32.mrb[0].mxu0
      %v980 = vpop.f32.mrb[0].mxu0
      %v981 = vadd.f32 0.0, %v980
      %v982 = vpop.f32.mrb[0].mxu0
      %983 = vmatprep.mubr.bf16.mxu0 0
      %984 = vmatmul.mubr.bf16.gmra.mrb[0].mxu0 %v540
      %v985 = vpop.f32.mrb[0].mxu0
      %v986 = vadd.f32 0.0, %v985
      %v987 = vpop.f32.mrb[0].mxu0
      %v988 = vpop.f32.mrb[0].mxu0
      %v989 = vadd.f32 0.0, %v988
      %v990 = vpop.f32.mrb[0].mxu0
      %991 = vmatprep.mubr.bf16.mxu0 0
      %992 = vmatmul.mubr.bf16.gmra.mrb[0].mxu0 %v541
      %v993 = vpop.f32.mrb[0].mxu0
      %v994 = vadd.f32 0.0, %v993
      %v995 = vpop.f32.mrb[0].mxu0
      %v996 = vpop.f32.mrb[0].mxu0
      %v997 = vadd.f32 0.0, %v996
      %v998 = vpop.f32.mrb[0].mxu0
      %999 = vmatprep.mubr.bf16.mxu0 0
      %1000 = vmatmul.mubr.bf16.gmra.mrb[0].mxu0 %v542
      %v1001 = vpop.f32.mrb[0].mxu0
      %v1002 = vadd.f32 0.0, %v1001
      %v1003 = vpop.f32.mrb[0].mxu0
      %v1004 = vpop.f32.mrb[0].mxu0
      %v1005 = vadd.f32 0.0, %v1004
      %v1006 = vpop.f32.mrb[0].mxu0
      %1007 = vmatprep.mubr.bf16.mxu0 0
      %1008 = vmatmul.mubr.bf16.gmra.mrb[0].mxu0 %v543
      %v1009 = vpop.f32.mrb[0].mxu0
      %v1010 = vadd.f32 0.0, %v1009
      %v1011 = vpop.f32.mrb[0].mxu0
      %v1012 = vpop.f32.mrb[0].mxu0
      %v1013 = vadd.f32 0.0, %v1012
      %v1014 = vpop.f32.mrb[0].mxu0
      %1015 = vmatprep.mubr.bf16.mxu0 0
      %1016 = vmatmul.mubr.bf16.gmra.mrb[0].mxu0 %v544
      %v1017 = vpop.f32.mrb[0].mxu0
      %v1018 = vadd.f32 0.0, %v1017
      %v1019 = vpop.f32.mrb[0].mxu0
      %v1020 = vpop.f32.mrb[0].mxu0
      %v1021 = vadd.f32 0.0, %v1020
      %v1022 = vpop.f32.mrb[0].mxu0
      %1023 = vmatprep.mubr.bf16.mxu0 0
      %1024 = vmatmul.mubr.bf16.gmra.mrb[0].mxu0 %v545
      %v1025 = vpop.f32.mrb[0].mxu0
      %v1026 = vadd.f32 0.0, %v1025
      %v1027 = vpop.f32.mrb[0].mxu0
      %v1028 = vpop.f32.mrb[0].mxu0
      %v1029 = vadd.f32 0.0, %v1028
      %v1030 = vpop.f32.mrb[0].mxu0
      %1031 = vmatprep.mubr.bf16.mxu0 0
      %1032 = vmatmul.mubr.bf16.gmra.mrb[0].mxu0 %v546
      %v1033 = vpop.f32.mrb[0].mxu0
      %v1034 = vadd.f32 0.0, %v1033
      %v1035 = vpop.f32.mrb[0].mxu0
      %v1036 = vpop.f32.mrb[0].mxu0
      %v1037 = vadd.f32 0.0, %v1036
      %v1038 = vpop.f32.mrb[0].mxu0
      %1039 = vmatprep.mubr.bf16.mxu0 0
      %1040 = vmatmul.mubr.bf16.gmra.mrb[0].mxu0 %v547
      %v1041 = vpop.f32.mrb[0].mxu0
      %v1042 = vadd.f32 0.0, %v1041
      %v1043 = vpop.f32.mrb[0].mxu0
      %v1044 = vpop.f32.mrb[0].mxu0
      %v1045 = vadd.f32 0.0, %v1044
      %v1046 = vpop.f32.mrb[0].mxu0
      %1047 = vmatprep.mubr.bf16.mxu0 0
      %1048 = vmatmul.mubr.bf16.gmra.mrb[0].mxu0 %v548
      %v1049 = vpop.f32.mrb[0].mxu0
      %v1050 = vadd.f32 0.0, %v1049
      %v1051 = vpop.f32.mrb[0].mxu0
      %v1052 = vpop.f32.mrb[0].mxu0
      %v1053 = vadd.f32 0.0, %v1052
      %v1054 = vpop.f32.mrb[0].mxu0
      %1055 = vmatprep.mubr.bf16.mxu0 0
      %1056 = vmatmul.mubr.bf16.gmra.mrb[0].mxu0 %v549
      %v1057 = vpop.f32.mrb[0].mxu0
      %v1058 = vadd.f32 0.0, %v1057
      %v1059 = vpop.f32.mrb[0].mxu0
      %v1060 = vpop.f32.mrb[0].mxu0
      %v1061 = vadd.f32 0.0, %v1060
      %v1062 = vpop.f32.mrb[0].mxu0
      %1063 = vmatprep.mubr.bf16.mxu0 0
      %1064 = vmatmul.mubr.bf16.gmra.mrb[0].mxu0 %v550
      %v1065 = vpop.f32.mrb[0].mxu0
      %v1066 = vadd.f32 0.0, %v1065
      %v1067 = vpop.f32.mrb[0].mxu0
      %v1068 = vpop.f32.mrb[0].mxu0
      %v1069 = vadd.f32 0.0, %v1068
      %v1070 = vpop.f32.mrb[0].mxu0
      %1071 = vmatprep.mubr.bf16.mxu0 0
      %1072 = vmatmul.mubr.bf16.gmra.mrb[0].mxu0 %v551
      %v1073 = vpop.f32.mrb[0].mxu0
      %v1074 = vadd.f32 0.0, %v1073
      %v1075 = vpop.f32.mrb[0].mxu0
      %v1076 = vpop.f32.mrb[0].mxu0
      %v1077 = vadd.f32 0.0, %v1076
      %v1078 = vpop.f32.mrb[0].mxu0
      %1079 = vmatprep.mubr.bf16.mxu0 0
      %1080 = vmatmul.mubr.bf16.gmra.mrb[0].mxu0 %v552
      %v1081 = vpop.f32.mrb[0].mxu0
      %v1082 = vadd.f32 0.0, %v1081
      %v1083 = vpop.f32.mrb[0].mxu0
      %v1084 = vpop.f32.mrb[0].mxu0
      %v1085 = vadd.f32 0.0, %v1084
      %v1086 = vpop.f32.mrb[0].mxu0
      %1087 = vmatprep.mubr.bf16.mxu0 0
      %1088 = vmatmul.mubr.bf16.gmra.mrb[0].mxu0 %v553
      %v1089 = vpop.f32.mrb[0].mxu0
      %v1090 = vadd.f32 0.0, %v1089
      %v1091 = vpop.f32.mrb[0].mxu0
      %v1092 = vpop.f32.mrb[0].mxu0
      %v1093 = vadd.f32 0.0, %v1092
      %v1094 = vpop.f32.mrb[0].mxu0
      %1095 = vmatprep.mubr.bf16.mxu0 0
      %1096 = vmatmul.mubr.bf16.gmra.mrb[0].mxu0 %v554
      %v1097 = vpop.f32.mrb[0].mxu0
      %v1098 = vadd.f32 0.0, %v1097
      %v1099 = vpop.f32.mrb[0].mxu0
      %v1100 = vpop.f32.mrb[0].mxu0
      %v1101 = vadd.f32 0.0, %v1100
      %v1102 = vpop.f32.mrb[0].mxu0
      %1103 = vdwg.mxu0
      %v1104 = vmax.f32 %v690, %v794
      %v1105 = vmax.f32 %v693, %v797
      %v1106 = vmax.f32 %v698, %v802
      %v1107 = vmax.f32 %v701, %v805
      %v1108 = vmax.f32 %v706, %v810
      %v1109 = vmax.f32 %v709, %v813
      %v1110 = vmax.f32 %v714, %v818
      %v1111 = vmax.f32 %v717, %v821
      %v1112 = vmax.f32 %v722, %v826
      %v1113 = vmax.f32 %v725, %v829
      %v1114 = vmax.f32 %v730, %v834
      %v1115 = vmax.f32 %v733, %v837
      %v1116 = vmax.f32 %v738, %v842
      %v1117 = vmax.f32 %v741, %v845
      %v1118 = vmax.f32 %v746, %v850
      %v1119 = vmax.f32 %v749, %v853
      %v1120 = vmax.f32 %v754, %v858
      %v1121 = vmax.f32 %v757, %v861
      %v1122 = vmax.f32 %v762, %v866
      %v1123 = vmax.f32 %v765, %v869
      %v1124 = vmax.f32 %v770, %v874
      %v1125 = vmax.f32 %v773, %v877
      %v1126 = vmax.f32 %v778, %v882
      %v1127 = vmax.f32 %v781, %v885
      %v1128 = vmax.f32 %v786, %v890
      %v1129 = vmax.f32 %v789, %v893
      %v1130 = vmax.f32 %v898, %v1002
      %v1131 = vmax.f32 %v901, %v1005
      %v1132 = vmax.f32 %v906, %v1010
      %v1133 = vmax.f32 %v909, %v1013
      %v1134 = vmax.f32 %v914, %v1018
      %v1135 = vmax.f32 %v917, %v1021
      %v1136 = vmax.f32 %v922, %v1026
      %v1137 = vmax.f32 %v925, %v1029
      %v1138 = vmax.f32 %v930, %v1034
      %v1139 = vmax.f32 %v933, %v1037
      %v1140 = vmax.f32 %v938, %v1042
      %v1141 = vmax.f32 %v941, %v1045
      %v1142 = vmax.f32 %v946, %v1050
      %v1143 = vmax.f32 %v949, %v1053
      %v1144 = vmax.f32 %v954, %v1058
      %v1145 = vmax.f32 %v957, %v1061
      %v1146 = vmax.f32 %v962, %v1066
      %v1147 = vmax.f32 %v965, %v1069
      %v1148 = vmax.f32 %v970, %v1074
      %v1149 = vmax.f32 %v973, %v1077
      %v1150 = vmax.f32 %v978, %v1082
      %v1151 = vmax.f32 %v981, %v1085
      %v1152 = vmax.f32 %v986, %v1090
      %v1153 = vmax.f32 %v989, %v1093
      %v1154 = vmax.f32 %v994, %v1098
      %v1155 = vmax.f32 %v997, %v1101
      %v1156 = vmax.f32 %v1104, %v1130
      %v1157 = vmax.f32 %v1105, %v1131
      %v1158 = vmax.f32 %v1106, %v1132
      %v1159 = vmax.f32 %v1107, %v1133
      %v1160 = vmax.f32 %v1108, %v1134
      %v1161 = vmax.f32 %v1109, %v1135
      %v1162 = vmax.f32 %v1110, %v1136
      %v1163 = vmax.f32 %v1111, %v1137
      %v1164 = vmax.f32 %v1112, %v1138
      %v1165 = vmax.f32 %v1113, %v1139
      %v1166 = vmax.f32 %v1114, %v1140
      %v1167 = vmax.f32 %v1115, %v1141
      %v1168 = vmax.f32 %v1116, %v1142
      %v1169 = vmax.f32 %v1117, %v1143
      %v1170 = vmax.f32 %v1118, %v1144
      %v1171 = vmax.f32 %v1119, %v1145
      %v1172 = vmax.f32 %v1120, %v1146
      %v1173 = vmax.f32 %v1121, %v1147
      %v1174 = vmax.f32 %v1122, %v1148
      %v1175 = vmax.f32 %v1123, %v1149
      %v1176 = vmax.f32 %v1124, %v1150
      %v1177 = vmax.f32 %v1125, %v1151
      %v1178 = vmax.f32 %v1126, %v1152
      %v1179 = vmax.f32 %v1127, %v1153
      %v1180 = vmax.f32 %v1128, %v1154
      %v1181 = vmax.f32 %v1129, %v1155
      %v1182 = vld [vmem:[%s2] sm:$0x1]
      %v1184 = vlaneseq
      %v1185 = vshrl.u32 %v1184, 7
      %v1186 = vsub.s32 0, %v1185
      %v1187 = vrot.slane %v1182, %v1186
      %v1189 = vadd.f32 %v1156, %v1187
      %v1190 = vadd.f32 %v1157, %v1187
      %v1191 = vadd.f32 %v1158, %v1187
      %v1192 = vadd.f32 %v1159, %v1187
      %v1193 = vadd.f32 %v1160, %v1187
      %v1194 = vadd.f32 %v1161, %v1187
      %v1195 = vadd.f32 %v1162, %v1187
      %v1196 = vadd.f32 %v1163, %v1187
      %v1197 = vadd.f32 %v1164, %v1187
      %v1198 = vadd.f32 %v1165, %v1187
      %v1199 = vadd.f32 %v1166, %v1187
      %v1200 = vadd.f32 %v1167, %v1187
      %v1201 = vadd.f32 %v1168, %v1187
      %v1202 = vadd.f32 %v1169, %v1187
      %v1203 = vadd.f32 %v1170, %v1187
      %v1204 = vadd.f32 %v1171, %v1187
      %v1205 = vadd.f32 %v1172, %v1187
      %v1206 = vadd.f32 %v1173, %v1187
      %v1207 = vadd.f32 %v1174, %v1187
      %v1208 = vadd.f32 %v1175, %v1187
      %v1209 = vadd.f32 %v1176, %v1187
      %v1210 = vadd.f32 %v1177, %v1187
      %v1211 = vadd.f32 %v1178, %v1187
      %v1212 = vadd.f32 %v1179, %v1187
      %v1213 = vadd.f32 %v1180, %v1187
      %v1214 = vadd.f32 %v1181, %v1187
      %v1215 = vmax.f32 %v1189, 0.0
      %v1216 = vmax.f32 %v1190, 0.0
      %v1217 = vmax.f32 %v1191, 0.0
      %v1218 = vmax.f32 %v1192, 0.0
      %v1219 = vmax.f32 %v1193, 0.0
      %v1220 = vmax.f32 %v1194, 0.0
      %v1221 = vmax.f32 %v1195, 0.0
      %v1222 = vmax.f32 %v1196, 0.0
      %v1223 = vmax.f32 %v1197, 0.0
      %v1224 = vmax.f32 %v1198, 0.0
      %v1225 = vmax.f32 %v1199, 0.0
      %v1226 = vmax.f32 %v1200, 0.0
      %v1227 = vmax.f32 %v1201, 0.0
      %v1228 = vmax.f32 %v1202, 0.0
      %v1229 = vmax.f32 %v1203, 0.0
      %v1230 = vmax.f32 %v1204, 0.0
      %v1231 = vmax.f32 %v1205, 0.0
      %v1232 = vmax.f32 %v1206, 0.0
      %v1233 = vmax.f32 %v1207, 0.0
      %v1234 = vmax.f32 %v1208, 0.0
      %v1235 = vmax.f32 %v1209, 0.0
      %v1236 = vmax.f32 %v1210, 0.0
      %v1237 = vmax.f32 %v1211, 0.0
      %v1238 = vmax.f32 %v1212, 0.0
      %v1239 = vmax.f32 %v1213, 0.0
      %v1240 = vmax.f32 %v1214, 0.0
      %v1241 = vpack.c.bf16 %v1216, %v1215
      %v1242 = vpack.c.bf16 %v1218, %v1217
      %v1243 = vpack.c.bf16 %v1220, %v1219
      %v1244 = vpack.c.bf16 %v1222, %v1221
      %v1245 = vpack.c.bf16 %v1224, %v1223
      %v1246 = vpack.c.bf16 %v1226, %v1225
      %v1247 = vpack.c.bf16 %v1228, %v1227
      %v1248 = vpack.c.bf16 %v1230, %v1229
      %v1249 = vpack.c.bf16 %v1232, %v1231
      %v1250 = vpack.c.bf16 %v1234, %v1233
      %v1251 = vpack.c.bf16 %v1236, %v1235
      %v1252 = vpack.c.bf16 %v1238, %v1237
      %v1253 = vpack.c.bf16 %v1240, %v1239
      %v1267 = vunpack.c.l.b16 %v1241
      %v1268 = vunpack.c.h.b16 %v1241
      %v1269 = vunpack.c.l.b16 %v1242
      %v1270 = vunpack.c.h.b16 %v1242
      %v1271 = vunpack.c.l.b16 %v1243
      %v1272 = vunpack.c.h.b16 %v1243
      %v1273 = vunpack.c.l.b16 %v1244
      %v1274 = vunpack.c.h.b16 %v1244
      %v1275 = vunpack.c.l.b16 %v1245
      %v1276 = vunpack.c.h.b16 %v1245
      %v1277 = vunpack.c.l.b16 %v1246
      %v1278 = vunpack.c.h.b16 %v1246
      %v1279 = vunpack.c.l.b16 %v1247
      %v1280 = vunpack.c.h.b16 %v1247
      %v1281 = vunpack.c.l.b16 %v1248
      %v1282 = vunpack.c.h.b16 %v1248
      %v1283 = vunpack.c.l.b16 %v1249
      %v1284 = vunpack.c.h.b16 %v1249
      %v1285 = vunpack.c.l.b16 %v1250
      %v1286 = vunpack.c.h.b16 %v1250
      %v1287 = vunpack.c.l.b16 %v1251
      %v1288 = vunpack.c.h.b16 %v1251
      %v1289 = vunpack.c.l.b16 %v1252
      %v1290 = vunpack.c.h.b16 %v1252
      %v1291 = vunpack.c.l.b16 %v1253
      %v1292 = vunpack.c.h.b16 %v1253
      %v1293 = vpack.c.b16 %v1267, %v1267
      %v1294 = vpack.c.b16 %v1268, %v1268
      %v1295 = vpack.c.b16 %v1269, %v1269
      %v1296 = vpack.c.b16 %v1270, %v1270
      %v1297 = vpack.c.b16 %v1271, %v1271
      %v1298 = vpack.c.b16 %v1272, %v1272
      %v1299 = vpack.c.b16 %v1273, %v1273
      %v1300 = vpack.c.b16 %v1274, %v1274
      %v1301 = vpack.c.b16 %v1275, %v1275
      %v1302 = vpack.c.b16 %v1276, %v1276
      %v1303 = vpack.c.b16 %v1277, %v1277
      %v1304 = vpack.c.b16 %v1278, %v1278
      %v1305 = vpack.c.b16 %v1279, %v1279
      %v1306 = vpack.c.b16 %v1280, %v1280
      %v1307 = vpack.c.b16 %v1281, %v1281
      %v1308 = vpack.c.b16 %v1282, %v1282
      %v1309 = vpack.c.b16 %v1283, %v1283
      %v1310 = vpack.c.b16 %v1284, %v1284
      %v1311 = vpack.c.b16 %v1285, %v1285
      %v1312 = vpack.c.b16 %v1286, %v1286
      %v1313 = vpack.c.b16 %v1287, %v1287
      %v1314 = vpack.c.b16 %v1288, %v1288
      %v1315 = vpack.c.b16 %v1289, %v1289
      %v1316 = vpack.c.b16 %v1290, %v1290
      %v1317 = vpack.c.b16 %v1291, %v1291
      %v1318 = vpack.c.b16 %v1292, %v1292
      %1345 = vst [vmem:[%s172] sm:$0xf] %v1293
      %1346 = vst [vmem:[%s172 + $0x4] sm:$0xf] %v1294
      %1347 = vst [vmem:[%s172 + $0x8] sm:$0xf] %v1295
      %1348 = vst [vmem:[%s172 + $0xc] sm:$0xf] %v1296
      %1349 = vst [vmem:[%s172 + $0x10] sm:$0xf] %v1297
      %1350 = vst [vmem:[%s172 + $0x14] sm:$0xf] %v1298
      %1351 = vst [vmem:[%s172 + $0x18] sm:$0xf] %v1299
      %1352 = vst [vmem:[%s172 + $0x1c] sm:$0xf] %v1300
      %1353 = vst [vmem:[%s172 + $0x20] sm:$0xf] %v1301
      %1354 = vst [vmem:[%s172 + $0x24] sm:$0xf] %v1302
      %1355 = vst [vmem:[%s172 + $0x28] sm:$0xf] %v1303
      %1356 = vst [vmem:[%s172 + $0x2c] sm:$0xf] %v1304
      %1357 = vst [vmem:[%s172 + $0x30] sm:$0xf] %v1305
      %1358 = vst [vmem:[%s172 + $0x34] sm:$0xf] %v1306
      %1359 = vst [vmem:[%s172 + $0x38] sm:$0xf] %v1307
      %1360 = vst [vmem:[%s172 + $0x3c] sm:$0xf] %v1308
      %1361 = vst [vmem:[%s172 + $0x40] sm:$0xf] %v1309
      %1362 = vst [vmem:[%s172 + $0x44] sm:$0xf] %v1310
      %1363 = vst [vmem:[%s172 + $0x48] sm:$0xf] %v1311
      %1364 = vst [vmem:[%s172 + $0x4c] sm:$0xf] %v1312
      %1365 = vst [vmem:[%s172 + $0x50] sm:$0xf] %v1313
      %1366 = vst [vmem:[%s172 + $0x54] sm:$0xf] %v1314
      %1367 = vst [vmem:[%s172 + $0x58] sm:$0xf] %v1315
      %1368 = vst [vmem:[%s172 + $0x5c] sm:$0xf] %v1316
      %1369 = vst [vmem:[%s172 + $0x60] sm:$0xf] %v1317
      %1370 = vst [vmem:[%s172 + $0x64] sm:$0xf] %v1318
      %s1371 = smul.u32 26, %s14
      %p1372 = scmp.lt.s32.totalorder %s1371, 51
      %s1373 = scalar_select %p1372, %s1371, 51
      %s1374 = smul.addr %s1373, 4
      %s1375 = scalar_lea.vmem %s3, %s1374
      // Predicated region
      $region33: #{forward.3} parent=31 // pred_check
        %p1376 = pneg %p100
      $region34: #{forward.3} parent=31 // pred_check_branch
        %1378 = sbr.rel (%p1376) target = $region36
      $region35: #{forward.3} parent=31 // pred_region
        %s1379 = smul.u32 26, %s14
      $region36: #{forward.3} parent=31 // pred_fallthru
        _
    $region32: #{forward.3} parent=5 // pred_fallthru
      _
    %p1380 = scmp.le.s32.totalorder 2, %s9
    // Predicated region
    $region37: #{forward.3} parent=5 // pred_check
      %p1381 = pneg %p1380
    $region38: #{forward.3} parent=5 // pred_check_branch
      %1383 = sbr.rel (%p1381) target = $region40
    $region39: #{forward.3} parent=5 // pred_region
      %s1384 = ssub.s32 %s9, 2
      // Predicated region
      $region41: #{forward.3} parent=39 // pred_check
        %p1385 = pneg %p106
      $region42: #{forward.3} parent=39 // pred_check_branch
        %1387 = sbr.rel (%p1385) target = $region44
      $region43: #{forward.3} parent=39 // pred_region
        %s1388 = smul.u32 26, %s15
        %p1389 = scmp.lt.s32.totalorder %s1388, 51
        %s1390 = scalar_select %p1389, %s1388, 51
        %s1391 = smul.addr %s1390, 4
        %s1392 = scalar_lea.vmem %s3, %s1391
      $region44: #{forward.3} parent=39 // pred_fallthru
        _
    $region40: #{forward.3} parent=5 // pred_fallthru
      _
  $region6: #{forward.3} parent=0 // loop_footer
    %s13 = sadd.s32 1, %s9
  $region7: #{forward.3} parent=0 // loop_footer_branch
    %8 = sbr.rel target = $region3
  $region8: #{forward.3} parent=0 // loop_exit
    _

// kernel: forward.4
$region0: #{forward.4}
  #allocation0 [shape = 'u32[]', space=smem, size = 0x4, offset = 0x4, fixed_abs, tag = 'smem constant byte address 0x4 - core index']
  #allocation1 [shape = 'u32[144,128]{1,0:T(1,128)}', space=vmem, size = 0x12000, scoped, tag = 'internal scratch']
  %s0 = inlined_call_operand.vmem [shape: bf16[256,256], index: 0, kind: input, shape index: {}]
  %s1 = inlined_call_operand.vmem [shape: bf16[256,128], index: 1, kind: input, shape index: {}]
  %s2 = inlined_call_operand.vmem [shape: f32[1,128], index: 2, kind: input, shape index: {}]
  %s3 = inlined_call_operand.vmem [shape: bf16[64,128], index: 3, kind: output, shape index: {}]
  %s4 = sld [smem:[#allocation0]]
  $region45: #{forward.4} parent=0
    _
  %s6 = ssub.s32 1, %s4
  %s7 = scalar_select 0, %s6, %s4
  loop: start=0, step=1, limit=4
  $region2: #{forward.4} parent=0 // loop_pre_header
    _
  $region3: #{forward.4} parent=0 // loop_header
    %s9 = sphi 0, %s13
    %p10 = scmp.ge.s32.totalorder %s9, 4
    %s19 = sphi 0, %s21
    %s22 = sphi 0, %s19
    %s23 = sphi 0, %s22
    %s39 = sphi 0, %s23
    %s43 = sphi 0, %s43
    %s45 = sphi 0, %s43
    %s46 = sphi 0, %s45
    %s60 = sphi 0, %s46
    %s64 = sphi 0, %s64
    %s66 = sphi 0, %s64
    %s67 = sphi 0, %s66
    %s81 = sphi 0, %s67
    %s87 = sphi 0, %s89
    %s90 = sphi 0, %s87
    %s91 = sphi 0, %s90
    %s107 = sphi 0, %s91
  $region4: #{forward.4} parent=0 // loop_header_branch
    %12 = sbr.rel (%p10) target = $region8
  $region5: #{forward.4} parent=0 // loop_body
    %s14 = ssub.s32 %s9, 1
    %s15 = ssub.s32 %s9, 2
    %s16 = sadd.s32 %s9, 1
    %s17 = ssub.s32 %s9, %s16
    %p18 = scmp.eq.s32.totalorder %s17, 0
    %s20 = sadd.s32 %s19, 1
    %s21 = scalar_select %p18, %s19, %s20
    %p24 = pneg %p18
    %p25 = scmp.eq.s32.totalorder %s9, 1
    %p26 = por %p24, %p25
    %p27 = scmp.ne.s32.totalorder %s19, %s22
    %p28 = scmp.eq.s32.totalorder %s9, 0
    %p29 = por %p27, %p28
    %p30 = scmp.ne.s32.totalorder %s19, %s22
    %p31 = scmp.eq.s32.totalorder %s14, 1
    %p32 = por %p30, %p31
    %p33 = scmp.ne.s32.totalorder %s22, %s23
    %p34 = scmp.eq.s32.totalorder %s14, 0
    %p35 = por %p33, %p34
    %p36 = scmp.ne.s32.totalorder %s22, %s23
    %p37 = scmp.eq.s32.totalorder %s15, 1
    %p38 = por %p36, %p37
    %p40 = scmp.ne.s32.totalorder %s23, %s39
    %p41 = scmp.eq.s32.totalorder %s15, 0
    %p42 = por %p40, %p41
    %s44 = sadd.s32 %s43, 1
    %p47 = scmp.eq.s32.totalorder %s9, 1
    %p48 = scmp.ne.s32.totalorder %s43, %s45
    %p49 = scmp.eq.s32.totalorder %s9, 0
    %p50 = por %p48, %p49
    %p51 = scmp.ne.s32.totalorder %s43, %s45
    %p52 = scmp.eq.s32.totalorder %s14, 1
    %p53 = por %p51, %p52
    %p54 = scmp.ne.s32.totalorder %s45, %s46
    %p55 = scmp.eq.s32.totalorder %s14, 0
    %p56 = por %p54, %p55
    %p57 = scmp.ne.s32.totalorder %s45, %s46
    %p58 = scmp.eq.s32.totalorder %s15, 1
    %p59 = por %p57, %p58
    %p61 = scmp.ne.s32.totalorder %s46, %s60
    %p62 = scmp.eq.s32.totalorder %s15, 0
    %p63 = por %p61, %p62
    %s65 = sadd.s32 %s64, 1
    %p68 = scmp.eq.s32.totalorder %s9, 1
    %p69 = scmp.ne.s32.totalorder %s64, %s66
    %p70 = scmp.eq.s32.totalorder %s9, 0
    %p71 = por %p69, %p70
    %p72 = scmp.ne.s32.totalorder %s64, %s66
    %p73 = scmp.eq.s32.totalorder %s14, 1
    %p74 = por %p72, %p73
    %p75 = scmp.ne.s32.totalorder %s66, %s67
    %p76 = scmp.eq.s32.totalorder %s14, 0
    %p77 = por %p75, %p76
    %p78 = scmp.ne.s32.totalorder %s66, %s67
    %p79 = scmp.eq.s32.totalorder %s15, 1
    %p80 = por %p78, %p79
    %p82 = scmp.ne.s32.totalorder %s67, %s81
    %p83 = scmp.eq.s32.totalorder %s15, 0
    %p84 = por %p82, %p83
    %s85 = ssub.s32 %s9, %s16
    %p86 = scmp.eq.s32.totalorder %s85, 0
    %s88 = sadd.s32 %s87, 1
    %s89 = scalar_select %p86, %s87, %s88
    %p92 = pneg %p86
    %p93 = scmp.eq.s32.totalorder %s9, 1
    %p94 = por %p92, %p93
    %p95 = scmp.ne.s32.totalorder %s87, %s90
    %p96 = scmp.eq.s32.totalorder %s9, 0
    %p97 = por %p95, %p96
    %p98 = scmp.ne.s32.totalorder %s87, %s90
    %p99 = scmp.eq.s32.totalorder %s14, 1
    %p100 = por %p98, %p99
    %p101 = scmp.ne.s32.totalorder %s90, %s91
    %p102 = scmp.eq.s32.totalorder %s14, 0
    %p103 = por %p101, %p102
    %p104 = scmp.ne.s32.totalorder %s90, %s91
    %p105 = scmp.eq.s32.totalorder %s15, 1
    %p106 = por %p104, %p105
    %p108 = scmp.ne.s32.totalorder %s91, %s107
    %p109 = scmp.eq.s32.totalorder %s15, 0
    %p110 = por %p108, %p109
    %p111 = scmp.le.s32.totalorder 1, %s9
    %p112 = scmp.lt.s32.totalorder %s9, 3
    %p113 = pnand %p111, %p112
    %p114 = pneg %p113
    // Predicated region
    $region9: #{forward.4} parent=5 // pred_check
      _
    $region10: #{forward.4} parent=5 // pred_check_branch
      %116 = sbr.rel (%p113) target = $region12
    $region11: #{forward.4} parent=5 // pred_region
      %s117 = ssub.s32 %s9, 1
      // Predicated region
      $region13: #{forward.4} parent=11 // pred_check
        %p118 = pneg %p56
      $region14: #{forward.4} parent=11 // pred_check_branch
        %120 = sbr.rel (%p118) target = $region16
      $region15: #{forward.4} parent=11 // pred_region
        _
      $region16: #{forward.4} parent=11 // pred_fallthru
        _
      // Predicated region
      $region17: #{forward.4} parent=11 // pred_check
        %p121 = pneg %p77
      $region18: #{forward.4} parent=11 // pred_check_branch
        %123 = sbr.rel (%p121) target = $region20
      $region19: #{forward.4} parent=11 // pred_region
        _
      $region20: #{forward.4} parent=11 // pred_fallthru
        _
    $region12: #{forward.4} parent=5 // pred_fallthru
      _
    %p124 = scmp.lt.s32.totalorder %s9, 2
    // Predicated region
    $region21: #{forward.4} parent=5 // pred_check
      %p125 = pneg %p124
    $region22: #{forward.4} parent=5 // pred_check_branch
      %127 = sbr.rel (%p125) target = $region24
    $region23: #{forward.4} parent=5 // pred_region
      // Predicated region
      $region25: #{forward.4} parent=23 // pred_check
        %p128 = pneg %p29
      $region26: #{forward.4} parent=23 // pred_check_branch
        %130 = sbr.rel (%p128) target = $region28
      $region27: #{forward.4} parent=23 // pred_region
        %s131 = smul.u32 16, %s9
        %p132 = scmp.lt.s32.totalorder %s131, 31
        %s133 = scalar_select %p132, %s131, 31
        %s134 = smul.addr %s133, 2
        %s135 = smul.addr %s134, 4
        %s136 = scalar_lea.vmem %s0, %s135
        %s137 = smul.u32 16, %s9
      $region28: #{forward.4} parent=23 // pred_fallthru
        _
    $region24: #{forward.4} parent=5 // pred_fallthru
      _
    %p138 = scmp.le.s32.totalorder 1, %s9
    %p139 = scmp.lt.s32.totalorder %s9, 3
    %p140 = pnand %p138, %p139
    %p141 = pneg %p140
    // Predicated region
    $region29: #{forward.4} parent=5 // pred_check
      _
    $region30: #{forward.4} parent=5 // pred_check_branch
      %143 = sbr.rel (%p140) target = $region32
    $region31: #{forward.4} parent=5 // pred_region
      %s144 = ssub.s32 %s9, 1
      %s145 = smul.u32 16, %s14
      %p146 = scmp.lt.s32.totalorder %s145, 31
      %s147 = scalar_select %p146, %s145, 31
      %s148 = smul.addr %s147, 2
      %s149 = smul.addr %s148, 4
      %s150 = scalar_lea.vmem %s0, %s149
      %p151 = pneg %p35
      %p152 = pneg %p32
      %p153 = pneg %p56
      %p154 = pneg %p53
      %p155 = pneg %p77
      %p156 = pneg %p74
      %p157 = pneg %p103
      %p158 = pneg %p100
      %s159 = smul.u32 4, %s14
      %p160 = scmp.lt.s32.totalorder %s159, 7
      %s161 = scalar_select %p160, %s159, 7
      %s162 = smul.addr %s161, 4
      %s163 = scalar_lea.vmem %s3, %s162
      %s164 = smul.u32 16, %s14
      %p165 = scmp.lt.s32.totalorder %s164, 31
      %s166 = scalar_select %p165, %s164, 31
      %s167 = smul.addr %s166, 2
      %s168 = smul.addr %s167, 4
      %s169 = scalar_lea.vmem %s0, %s168
      %s170 = smul.u32 16, %s14
      %s171 = smul.u32 4, %s14
      %p172 = scmp.lt.s32.totalorder %s171, 7
      %s173 = scalar_select %p172, %s171, 7
      %s174 = smul.addr %s173, 4
      %s175 = scalar_lea.vmem %s3, %s174
      %s176 = smul.u32 4, %s14
      %v178 = vld [vmem:[%s169] sm:$0xff]
      %v179 = vld [vmem:[%s169 + $0x8] sm:$0xff]
      %v180 = vld [vmem:[%s169 + $0x10] sm:$0xff]
      %v181 = vld [vmem:[%s169 + $0x18] sm:$0xff]
      %v182 = vld [vmem:[%s169 + $0x20] sm:$0xff]
      %v183 = vld [vmem:[%s169 + $0x28] sm:$0xff]
      %v184 = vld [vmem:[%s169 + $0x30] sm:$0xff]
      %v185 = vld [vmem:[%s169 + $0x38] sm:$0xff]
      %v186 = vld [vmem:[%s169 + $0x40] sm:$0xff]
      %v187 = vld [vmem:[%s169 + $0x48] sm:$0xff]
      %v188 = vld [vmem:[%s169 + $0x50] sm:$0xff]
      %v189 = vld [vmem:[%s169 + $0x58] sm:$0xff]
      %v190 = vld [vmem:[%s169 + $0x60] sm:$0xff]
      %v191 = vld [vmem:[%s169 + $0x68] sm:$0xff]
      %v192 = vld [vmem:[%s169 + $0x70] sm:$0xff]
      %v193 = vld [vmem:[%s169 + $0x78] sm:$0xff]
      %v194 = vld [vmem:[%s1] sm:$0xf]
      %v195 = vld [vmem:[%s1 + $0x4] sm:$0xf]
      %v196 = vld [vmem:[%s1 + $0x8] sm:$0xf]
      %v197 = vld [vmem:[%s1 + $0xc] sm:$0xf]
      %v198 = vld [vmem:[%s1 + $0x10] sm:$0xf]
      %v199 = vld [vmem:[%s1 + $0x14] sm:$0xf]
      %v200 = vld [vmem:[%s1 + $0x18] sm:$0xf]
      %v201 = vld [vmem:[%s1 + $0x1c] sm:$0xf]
      %v202 = vld [vmem:[%s1 + $0x20] sm:$0xf]
      %v203 = vld [vmem:[%s1 + $0x24] sm:$0xf]
      %v204 = vld [vmem:[%s1 + $0x28] sm:$0xf]
      %v205 = vld [vmem:[%s1 + $0x2c] sm:$0xf]
      %v206 = vld [vmem:[%s1 + $0x30] sm:$0xf]
      %v207 = vld [vmem:[%s1 + $0x34] sm:$0xf]
      %v208 = vld [vmem:[%s1 + $0x38] sm:$0xf]
      %v209 = vld [vmem:[%s1 + $0x3c] sm:$0xf]
      %v210 = vld [vmem:[%s1 + $0x40] sm:$0xf]
      %v211 = vld [vmem:[%s1 + $0x44] sm:$0xf]
      %v212 = vld [vmem:[%s1 + $0x48] sm:$0xf]
      %v213 = vld [vmem:[%s1 + $0x4c] sm:$0xf]
      %v214 = vld [vmem:[%s1 + $0x50] sm:$0xf]
      %v215 = vld [vmem:[%s1 + $0x54] sm:$0xf]
      %v216 = vld [vmem:[%s1 + $0x58] sm:$0xf]
      %v217 = vld [vmem:[%s1 + $0x5c] sm:$0xf]
      %v218 = vld [vmem:[%s1 + $0x60] sm:$0xf]
      %v219 = vld [vmem:[%s1 + $0x64] sm:$0xf]
      %v220 = vld [vmem:[%s1 + $0x68] sm:$0xf]
      %v221 = vld [vmem:[%s1 + $0x6c] sm:$0xf]
      %v222 = vld [vmem:[%s1 + $0x70] sm:$0xf]
      %v223 = vld [vmem:[%s1 + $0x74] sm:$0xf]
      %v224 = vld [vmem:[%s1 + $0x78] sm:$0xf]
      %v225 = vld [vmem:[%s1 + $0x7c] sm:$0xf]
      %v242 = vunpack.c.l.b16 %v178
      %v243 = vunpack.c.h.b16 %v178
      %v244 = vunpack.c.l.b16 %v179
      %v245 = vunpack.c.h.b16 %v179
      %v246 = vunpack.c.l.b16 %v180
      %v247 = vunpack.c.h.b16 %v180
      %v248 = vunpack.c.l.b16 %v181
      %v249 = vunpack.c.h.b16 %v181
      %v250 = vunpack.c.l.b16 %v182
      %v251 = vunpack.c.h.b16 %v182
      %v252 = vunpack.c.l.b16 %v183
      %v253 = vunpack.c.h.b16 %v183
      %v254 = vunpack.c.l.b16 %v184
      %v255 = vunpack.c.h.b16 %v184
      %v256 = vunpack.c.l.b16 %v185
      %v257 = vunpack.c.h.b16 %v185
      %v258 = vunpack.c.l.b16 %v186
      %v259 = vunpack.c.h.b16 %v186
      %v260 = vunpack.c.l.b16 %v187
      %v261 = vunpack.c.h.b16 %v187
      %v262 = vunpack.c.l.b16 %v188
      %v263 = vunpack.c.h.b16 %v188
      %v264 = vunpack.c.l.b16 %v189
      %v265 = vunpack.c.h.b16 %v189
      %v266 = vunpack.c.l.b16 %v190
      %v267 = vunpack.c.h.b16 %v190
      %v268 = vunpack.c.l.b16 %v191
      %v269 = vunpack.c.h.b16 %v191
      %v270 = vunpack.c.l.b16 %v192
      %v271 = vunpack.c.h.b16 %v192
      %v272 = vunpack.c.l.b16 %v193
      %v273 = vunpack.c.h.b16 %v193
      %v274 = vpack.c.b16 %v244, %v242
      %v275 = vpack.c.b16 %v245, %v243
      %v276 = vpack.c.b16 %v248, %v246
      %v277 = vpack.c.b16 %v249, %v247
      %v278 = vpack.c.b16 %v252, %v250
      %v279 = vpack.c.b16 %v253, %v251
      %v280 = vpack.c.b16 %v256, %v254
      %v281 = vpack.c.b16 %v257, %v255
      %v282 = vpack.c.b16 %v260, %v258
      %v283 = vpack.c.b16 %v261, %v259
      %v284 = vpack.c.b16 %v264, %v262
      %v285 = vpack.c.b16 %v265, %v263
      %v286 = vpack.c.b16 %v268, %v266
      %v287 = vpack.c.b16 %v269, %v267
      %v288 = vpack.c.b16 %v272, %v270
      %v289 = vpack.c.b16 %v273, %v271
      %v338 = vunpack.c.l.b16 %v194
      %v339 = vunpack.c.l.b16 %v195
      %v340 = vunpack.c.l.b16 %v196
      %v341 = vunpack.c.l.b16 %v197
      %v342 = vunpack.c.l.b16 %v198
      %v343 = vunpack.c.l.b16 %v199
      %v344 = vunpack.c.l.b16 %v200
      %v345 = vunpack.c.l.b16 %v201
      %v346 = vunpack.c.l.b16 %v202
      %v347 = vunpack.c.l.b16 %v203
      %v348 = vunpack.c.l.b16 %v204
      %v349 = vunpack.c.l.b16 %v205
      %v350 = vunpack.c.l.b16 %v206
      %v351 = vunpack.c.l.b16 %v207
      %v352 = vunpack.c.l.b16 %v208
      %v353 = vunpack.c.l.b16 %v209
      %v354 = vunpack.c.l.b16 %v210
      %v355 = vunpack.c.l.b16 %v211
      %v356 = vunpack.c.l.b16 %v212
      %v357 = vunpack.c.l.b16 %v213
      %v358 = vunpack.c.l.b16 %v214
      %v359 = vunpack.c.l.b16 %v215
      %v360 = vunpack.c.l.b16 %v216
      %v361 = vunpack.c.l.b16 %v217
      %v362 = vunpack.c.l.b16 %v218
      %v363 = vunpack.c.l.b16 %v219
      %v364 = vunpack.c.l.b16 %v220
      %v365 = vunpack.c.l.b16 %v221
      %v366 = vunpack.c.l.b16 %v222
      %v367 = vunpack.c.l.b16 %v223
      %v368 = vunpack.c.l.b16 %v224
      %v369 = vunpack.c.l.b16 %v225
      %v370 = vpack.c.b16 %v339, %v338
      %v371 = vpack.c.b16 %v341, %v340
      %v372 = vpack.c.b16 %v343, %v342
      %v373 = vpack.c.b16 %v345, %v344
      %v374 = vpack.c.b16 %v347, %v346
      %v375 = vpack.c.b16 %v349, %v348
      %v376 = vpack.c.b16 %v351, %v350
      %v377 = vpack.c.b16 %v353, %v352
      %v378 = vpack.c.b16 %v355, %v354
      %v379 = vpack.c.b16 %v357, %v356
      %v380 = vpack.c.b16 %v359, %v358
      %v381 = vpack.c.b16 %v361, %v360
      %v382 = vpack.c.b16 %v363, %v362
      %v383 = vpack.c.b16 %v365, %v364
      %v384 = vpack.c.b16 %v367, %v366
      %v385 = vpack.c.b16 %v369, %v368
      %402 = vmatprep.subr.bf16.mxu0 0
      %403 = vmatpush1.bf16.msra.mxu0 %v370
      %404 = vmatprep.subr.bf16.mxu0 0
      %405 = vmatpush1.bf16.msra.mxu0 %v371
      %406 = vmatprep.subr.bf16.mxu0 0
      %407 = vmatpush1.bf16.msra.mxu0 %v372
      %408 = vmatprep.subr.bf16.mxu0 0
      %409 = vmatpush1.bf16.msra.mxu0 %v373
      %410 = vmatprep.subr.bf16.mxu0 0
      %411 = vmatpush1.bf16.msra.mxu0 %v374
      %412 = vmatprep.subr.bf16.mxu0 0
      %413 = vmatpush1.bf16.msra.mxu0 %v375
      %414 = vmatprep.subr.bf16.mxu0 0
      %415 = vmatpush1.bf16.msra.mxu0 %v376
      %416 = vmatprep.subr.bf16.mxu0 0
      %417 = vmatpush1.bf16.msra.mxu0 %v377
      %418 = vmatprep.subr.bf16.mxu0 0
      %419 = vmatpush1.bf16.msra.mxu0 %v378
      %420 = vmatprep.subr.bf16.mxu0 0
      %421 = vmatpush1.bf16.msra.mxu0 %v379
      %422 = vmatprep.subr.bf16.mxu0 0
      %423 = vmatpush1.bf16.msra.mxu0 %v380
      %424 = vmatprep.subr.bf16.mxu0 0
      %425 = vmatpush1.bf16.msra.mxu0 %v381
      %426 = vmatprep.subr.bf16.mxu0 0
      %427 = vmatpush1.bf16.msra.mxu0 %v382
      %428 = vmatprep.subr.bf16.mxu0 0
      %429 = vmatpush1.bf16.msra.mxu0 %v383
      %430 = vmatprep.subr.bf16.mxu0 0
      %431 = vmatpush1.bf16.msra.mxu0 %v384
      %432 = vmatprep.subr.bf16.mxu0 0
      %433 = vmatpush1.bf16.msra.mxu0 %v385
      %434 = vmatprep.mubr.bf16.mxu0 %v275
      %435 = vmatmul.mubr.bf16.gmra.mrb[0].mxu0 %v274
      %v436 = vpop.f32.mrb[0].mxu0
      %v437 = vadd.f32 0.0, %v436
      %v438 = vpop.f32.mrb[0].mxu0
      %v439 = vpop.f32.mrb[0].mxu0
      %v440 = vadd.f32 0.0, %v439
      %v441 = vpop.f32.mrb[0].mxu0
      %442 = vmatprep.mubr.bf16.mxu0 %v277
      %443 = vmatmul.mubr.bf16.gmra.mrb[0].mxu0 %v276
      %v444 = vpop.f32.mrb[0].mxu0
      %v445 = vadd.f32 0.0, %v444
      %v446 = vpop.f32.mrb[0].mxu0
      %v447 = vpop.f32.mrb[0].mxu0
      %v448 = vadd.f32 0.0, %v447
      %v449 = vpop.f32.mrb[0].mxu0
      %450 = vmatprep.mubr.bf16.mxu0 %v279
      %451 = vmatmul.mubr.bf16.gmra.mrb[0].mxu0 %v278
      %v452 = vpop.f32.mrb[0].mxu0
      %v453 = vadd.f32 0.0, %v452
      %v454 = vpop.f32.mrb[0].mxu0
      %v455 = vpop.f32.mrb[0].mxu0
      %v456 = vadd.f32 0.0, %v455
      %v457 = vpop.f32.mrb[0].mxu0
      %458 = vmatprep.mubr.bf16.mxu0 %v281
      %459 = vmatmul.mubr.bf16.gmra.mrb[0].mxu0 %v280
      %v460 = vpop.f32.mrb[0].mxu0
      %v461 = vadd.f32 0.0, %v460
      %v462 = vpop.f32.mrb[0].mxu0
      %v463 = vpop.f32.mrb[0].mxu0
      %v464 = vadd.f32 0.0, %v463
      %v465 = vpop.f32.mrb[0].mxu0
      %466 = vmatprep.mubr.bf16.mxu0 %v283
      %467 = vmatmul.mubr.bf16.gmra.mrb[0].mxu0 %v282
      %v468 = vpop.f32.mrb[0].mxu0
      %v469 = vadd.f32 0.0, %v468
      %v470 = vpop.f32.mrb[0].mxu0
      %v471 = vpop.f32.mrb[0].mxu0
      %v472 = vadd.f32 0.0, %v471
      %v473 = vpop.f32.mrb[0].mxu0
      %474 = vmatprep.mubr.bf16.mxu0 %v285
      %475 = vmatmul.mubr.bf16.gmra.mrb[0].mxu0 %v284
      %v476 = vpop.f32.mrb[0].mxu0
      %v477 = vadd.f32 0.0, %v476
      %v478 = vpop.f32.mrb[0].mxu0
      %v479 = vpop.f32.mrb[0].mxu0
      %v480 = vadd.f32 0.0, %v479
      %v481 = vpop.f32.mrb[0].mxu0
      %482 = vmatprep.mubr.bf16.mxu0 %v287
      %483 = vmatmul.mubr.bf16.gmra.mrb[0].mxu0 %v286
      %v484 = vpop.f32.mrb[0].mxu0
      %v485 = vadd.f32 0.0, %v484
      %v486 = vpop.f32.mrb[0].mxu0
      %v487 = vpop.f32.mrb[0].mxu0
      %v488 = vadd.f32 0.0, %v487
      %v489 = vpop.f32.mrb[0].mxu0
      %490 = vmatprep.mubr.bf16.mxu0 %v289
      %491 = vmatmul.mubr.bf16.gmra.mrb[0].mxu0 %v288
      %v492 = vpop.f32.mrb[0].mxu0
      %v493 = vadd.f32 0.0, %v492
      %v494 = vpop.f32.mrb[0].mxu0
      %v495 = vpop.f32.mrb[0].mxu0
      %v496 = vadd.f32 0.0, %v495
      %v497 = vpop.f32.mrb[0].mxu0
      %498 = vdwg.mxu0
      %v499 = vmax.f32 %v437, %v453
      %v500 = vmax.f32 %v440, %v456
      %v501 = vmax.f32 %v445, %v461
      %v502 = vmax.f32 %v448, %v464
      %v503 = vmax.f32 %v469, %v485
      %v504 = vmax.f32 %v472, %v488
      %v505 = vmax.f32 %v477, %v493
      %v506 = vmax.f32 %v480, %v496
      %v507 = vmax.f32 %v499, %v503
      %v508 = vmax.f32 %v500, %v504
      %v509 = vmax.f32 %v501, %v505
      %v510 = vmax.f32 %v502, %v506
      %v511 = vld [vmem:[%s2] sm:$0x1]
      %v513 = vlaneseq
      %v514 = vshrl.u32 %v513, 7
      %v515 = vsub.s32 0, %v514
      %v516 = vrot.slane %v511, %v515
      %v518 = vadd.f32 %v507, %v516
      %v519 = vadd.f32 %v508, %v516
      %v520 = vadd.f32 %v509, %v516
      %v521 = vadd.f32 %v510, %v516
      %v522 = vmax.f32 %v518, 0.0
      %v523 = vmax.f32 %v519, 0.0
      %v524 = vmax.f32 %v520, 0.0
      %v525 = vmax.f32 %v521, 0.0
      %v526 = vpack.c.bf16 %v523, %v522
      %v527 = vpack.c.bf16 %v525, %v524
      %v530 = vunpack.c.l.b16 %v526
      %v531 = vunpack.c.h.b16 %v526
      %v532 = vunpack.c.l.b16 %v527
      %v533 = vunpack.c.h.b16 %v527
      %v534 = vpack.c.b16 %v530, %v530
      %v535 = vpack.c.b16 %v531, %v531
      %v536 = vpack.c.b16 %v532, %v532
      %v537 = vpack.c.b16 %v533, %v533
      %542 = vst [vmem:[%s175] sm:$0xf] %v534
      %543 = vst [vmem:[%s175 + $0x4] sm:$0xf] %v535
      %544 = vst [vmem:[%s175 + $0x8] sm:$0xf] %v536
      %545 = vst [vmem:[%s175 + $0xc] sm:$0xf] %v537
      %s546 = smul.u32 4, %s14
      %p547 = scmp.lt.s32.totalorder %s546, 7
      %s548 = scalar_select %p547, %s546, 7
      %s549 = smul.addr %s548, 4
      %s550 = scalar_lea.vmem %s3, %s549
      // Predicated region
      $region33: #{forward.4} parent=31 // pred_check
        %p551 = pneg %p100
      $region34: #{forward.4} parent=31 // pred_check_branch
        %553 = sbr.rel (%p551) target = $region36
      $region35: #{forward.4} parent=31 // pred_region
        %s554 = smul.u32 4, %s14
      $region36: #{forward.4} parent=31 // pred_fallthru
        _
    $region32: #{forward.4} parent=5 // pred_fallthru
      _
    %p555 = scmp.le.s32.totalorder 2, %s9
    // Predicated region
    $region37: #{forward.4} parent=5 // pred_check
      %p556 = pneg %p555
    $region38: #{forward.4} parent=5 // pred_check_branch
      %558 = sbr.rel (%p556) target = $region40
    $region39: #{forward.4} parent=5 // pred_region
      %s559 = ssub.s32 %s9, 2
      // Predicated region
      $region41: #{forward.4} parent=39 // pred_check
        %p560 = pneg %p106
      $region42: #{forward.4} parent=39 // pred_check_branch
        %562 = sbr.rel (%p560) target = $region44
      $region43: #{forward.4} parent=39 // pred_region
        %s563 = smul.u32 4, %s15
        %p564 = scmp.lt.s32.totalorder %s563, 7
        %s565 = scalar_select %p564, %s563, 7
        %s566 = smul.addr %s565, 4
        %s567 = scalar_lea.vmem %s3, %s566
      $region44: #{forward.4} parent=39 // pred_fallthru
        _
    $region40: #{forward.4} parent=5 // pred_fallthru
      _
  $region6: #{forward.4} parent=0 // loop_footer
    %s13 = sadd.s32 1, %s9
  $region7: #{forward.4} parent=0 // loop_footer_branch
    %8 = sbr.rel target = $region3
  $region8: #{forward.4} parent=0 // loop_exit
    _

// kernel: forward.5
$region0: #{forward.5}
  #allocation0 [shape = 'u32[]', space=smem, size = 0x4, offset = 0x4, fixed_abs, tag = 'smem constant byte address 0x4 - core index']
  #allocation1 [shape = 'u32[144,128]{1,0:T(1,128)}', space=vmem, size = 0x12000, scoped, tag = 'internal scratch']
  %s0 = inlined_call_operand.vmem [shape: bf16[16,512], index: 0, kind: input, shape index: {}]
  %s1 = inlined_call_operand.vmem [shape: bf16[512,128], index: 1, kind: input, shape index: {}]
  %s2 = inlined_call_operand.vmem [shape: f32[1,128], index: 2, kind: input, shape index: {}]
  %s3 = inlined_call_operand.vmem [shape: bf16[128,128], index: 3, kind: input, shape index: {}]
  %s4 = inlined_call_operand.vmem [shape: f32[1,128], index: 4, kind: input, shape index: {}]
  %s5 = inlined_call_operand.vmem [shape: bf16[128,128], index: 5, kind: input, shape index: {}]
  %s6 = inlined_call_operand.vmem [shape: f32[1,128], index: 6, kind: input, shape index: {}]
  %s7 = inlined_call_operand.vmem [shape: f32[16,128], index: 7, kind: output, shape index: {}]
  %s8 = sld [smem:[#allocation0]]
  $region38: #{forward.5} parent=0
    _
  %s10 = ssub.s32 1, %s8
  %s11 = scalar_select 0, %s10, %s8
  // Predicated region
  $region2: #{forward.5} parent=0 // pred_check
    _
  $region3: #{forward.5} parent=0 // pred_check_branch
    %13 = sbr.rel (0) target = $region5
  $region4: #{forward.5} parent=0 // pred_region
    _
  $region5: #{forward.5} parent=0 // pred_fallthru
    _
  // Predicated region
  $region6: #{forward.5} parent=0 // pred_check
    _
  $region7: #{forward.5} parent=0 // pred_check_branch
    %15 = sbr.rel (0) target = $region9
  $region8: #{forward.5} parent=0 // pred_region
    _
  $region9: #{forward.5} parent=0 // pred_fallthru
    _
  // Predicated region
  $region10: #{forward.5} parent=0 // pred_check
    _
  $region11: #{forward.5} parent=0 // pred_check_branch
    %17 = sbr.rel (0) target = $region13
  $region12: #{forward.5} parent=0 // pred_region
    _
  $region13: #{forward.5} parent=0 // pred_fallthru
    _
  // Predicated region
  $region14: #{forward.5} parent=0 // pred_check
    _
  $region15: #{forward.5} parent=0 // pred_check_branch
    %19 = sbr.rel (0) target = $region17
  $region16: #{forward.5} parent=0 // pred_region
    _
  $region17: #{forward.5} parent=0 // pred_fallthru
    _
  // Predicated region
  $region18: #{forward.5} parent=0 // pred_check
    _
  $region19: #{forward.5} parent=0 // pred_check_branch
    %21 = sbr.rel (0) target = $region21
  $region20: #{forward.5} parent=0 // pred_region
    _
  $region21: #{forward.5} parent=0 // pred_fallthru
    _
  // Predicated region
  $region22: #{forward.5} parent=0 // pred_check
    _
  $region23: #{forward.5} parent=0 // pred_check_branch
    %23 = sbr.rel (0) target = $region25
  $region24: #{forward.5} parent=0 // pred_region
    _
  $region25: #{forward.5} parent=0 // pred_fallthru
    _
  // Predicated region
  $region26: #{forward.5} parent=0 // pred_check
    _
  $region27: #{forward.5} parent=0 // pred_check_branch
    %25 = sbr.rel (0) target = $region29
  $region28: #{forward.5} parent=0 // pred_region
    _
  $region29: #{forward.5} parent=0 // pred_fallthru
    _
  %v27 = vld [vmem:[%s0] sm:$0xff]
  %v28 = vld [vmem:[%s0 + $0x8] sm:$0xff]
  %v29 = vld [vmem:[%s0 + $0x10] sm:$0xff]
  %v30 = vld [vmem:[%s0 + $0x18] sm:$0xff]
  %v31 = vld [vmem:[%s1] sm:$0xf]
  %v32 = vld [vmem:[%s1 + $0x4] sm:$0xf]
  %v33 = vld [vmem:[%s1 + $0x8] sm:$0xf]
  %v34 = vld [vmem:[%s1 + $0xc] sm:$0xf]
  %v35 = vld [vmem:[%s1 + $0x10] sm:$0xf]
  %v36 = vld [vmem:[%s1 + $0x14] sm:$0xf]
  %v37 = vld [vmem:[%s1 + $0x18] sm:$0xf]
  %v38 = vld [vmem:[%s1 + $0x1c] sm:$0xf]
  %v39 = vld [vmem:[%s1 + $0x20] sm:$0xf]
  %v40 = vld [vmem:[%s1 + $0x24] sm:$0xf]
  %v41 = vld [vmem:[%s1 + $0x28] sm:$0xf]
  %v42 = vld [vmem:[%s1 + $0x2c] sm:$0xf]
  %v43 = vld [vmem:[%s1 + $0x30] sm:$0xf]
  %v44 = vld [vmem:[%s1 + $0x34] sm:$0xf]
  %v45 = vld [vmem:[%s1 + $0x38] sm:$0xf]
  %v46 = vld [vmem:[%s1 + $0x3c] sm:$0xf]
  %v47 = vld [vmem:[%s1 + $0x40] sm:$0xf]
  %v48 = vld [vmem:[%s1 + $0x44] sm:$0xf]
  %v49 = vld [vmem:[%s1 + $0x48] sm:$0xf]
  %v50 = vld [vmem:[%s1 + $0x4c] sm:$0xf]
  %v51 = vld [vmem:[%s1 + $0x50] sm:$0xf]
  %v52 = vld [vmem:[%s1 + $0x54] sm:$0xf]
  %v53 = vld [vmem:[%s1 + $0x58] sm:$0xf]
  %v54 = vld [vmem:[%s1 + $0x5c] sm:$0xf]
  %v55 = vld [vmem:[%s1 + $0x60] sm:$0xf]
  %v56 = vld [vmem:[%s1 + $0x64] sm:$0xf]
  %v57 = vld [vmem:[%s1 + $0x68] sm:$0xf]
  %v58 = vld [vmem:[%s1 + $0x6c] sm:$0xf]
  %v59 = vld [vmem:[%s1 + $0x70] sm:$0xf]
  %v60 = vld [vmem:[%s1 + $0x74] sm:$0xf]
  %v61 = vld [vmem:[%s1 + $0x78] sm:$0xf]
  %v62 = vld [vmem:[%s1 + $0x7c] sm:$0xf]
  %v63 = vld [vmem:[%s1 + $0x80] sm:$0xf]
  %v64 = vld [vmem:[%s1 + $0x84] sm:$0xf]
  %v65 = vld [vmem:[%s1 + $0x88] sm:$0xf]
  %v66 = vld [vmem:[%s1 + $0x8c] sm:$0xf]
  %v67 = vld [vmem:[%s1 + $0x90] sm:$0xf]
  %v68 = vld [vmem:[%s1 + $0x94] sm:$0xf]
  %v69 = vld [vmem:[%s1 + $0x98] sm:$0xf]
  %v70 = vld [vmem:[%s1 + $0x9c] sm:$0xf]
  %v71 = vld [vmem:[%s1 + $0xa0] sm:$0xf]
  %v72 = vld [vmem:[%s1 + $0xa4] sm:$0xf]
  %v73 = vld [vmem:[%s1 + $0xa8] sm:$0xf]
  %v74 = vld [vmem:[%s1 + $0xac] sm:$0xf]
  %v75 = vld [vmem:[%s1 + $0xb0] sm:$0xf]
  %v76 = vld [vmem:[%s1 + $0xb4] sm:$0xf]
  %v77 = vld [vmem:[%s1 + $0xb8] sm:$0xf]
  %v78 = vld [vmem:[%s1 + $0xbc] sm:$0xf]
  %v79 = vld [vmem:[%s1 + $0xc0] sm:$0xf]
  %v80 = vld [vmem:[%s1 + $0xc4] sm:$0xf]
  %v81 = vld [vmem:[%s1 + $0xc8] sm:$0xf]
  %v82 = vld [vmem:[%s1 + $0xcc] sm:$0xf]
  %v83 = vld [vmem:[%s1 + $0xd0] sm:$0xf]
  %v84 = vld [vmem:[%s1 + $0xd4] sm:$0xf]
  %v85 = vld [vmem:[%s1 + $0xd8] sm:$0xf]
  %v86 = vld [vmem:[%s1 + $0xdc] sm:$0xf]
  %v87 = vld [vmem:[%s1 + $0xe0] sm:$0xf]
  %v88 = vld [vmem:[%s1 + $0xe4] sm:$0xf]
  %v89 = vld [vmem:[%s1 + $0xe8] sm:$0xf]
  %v90 = vld [vmem:[%s1 + $0xec] sm:$0xf]
  %v91 = vld [vmem:[%s1 + $0xf0] sm:$0xf]
  %v92 = vld [vmem:[%s1 + $0xf4] sm:$0xf]
  %v93 = vld [vmem:[%s1 + $0xf8] sm:$0xf]
  %v94 = vld [vmem:[%s1 + $0xfc] sm:$0xf]
  %v95 = vld [vmem:[%s2] sm:$0x1]
  %v97 = vlaneseq
  %v98 = vshrl.u32 %v97, 7
  %v99 = vsub.s32 0, %v98
  %v100 = vrot.slane %v95, %v99
  %v106 = vunpack.c.l.b16 %v27
  %v107 = vunpack.c.h.b16 %v27
  %v108 = vunpack.c.l.b16 %v28
  %v109 = vunpack.c.h.b16 %v28
  %v110 = vunpack.c.l.b16 %v29
  %v111 = vunpack.c.h.b16 %v29
  %v112 = vunpack.c.l.b16 %v30
  %v113 = vunpack.c.h.b16 %v30
  %v114 = vpack.c.b16 %v110, %v106
  %v115 = vpack.c.b16 %v111, %v107
  %v116 = vpack.c.b16 %v112, %v108
  %v117 = vpack.c.b16 %v113, %v109
  %v186 = vunpack.c.l.b16 %v31
  %v187 = vunpack.c.l.b16 %v32
  %v188 = vunpack.c.l.b16 %v33
  %v189 = vunpack.c.l.b16 %v34
  %v190 = vunpack.c.l.b16 %v35
  %v191 = vunpack.c.l.b16 %v36
  %v192 = vunpack.c.l.b16 %v37
  %v193 = vunpack.c.l.b16 %v38
  %v194 = vunpack.c.l.b16 %v39
  %v195 = vunpack.c.l.b16 %v40
  %v196 = vunpack.c.l.b16 %v41
  %v197 = vunpack.c.l.b16 %v42
  %v198 = vunpack.c.l.b16 %v43
  %v199 = vunpack.c.l.b16 %v44
  %v200 = vunpack.c.l.b16 %v45
  %v201 = vunpack.c.l.b16 %v46
  %v202 = vunpack.c.l.b16 %v47
  %v203 = vunpack.c.l.b16 %v48
  %v204 = vunpack.c.l.b16 %v49
  %v205 = vunpack.c.l.b16 %v50
  %v206 = vunpack.c.l.b16 %v51
  %v207 = vunpack.c.l.b16 %v52
  %v208 = vunpack.c.l.b16 %v53
  %v209 = vunpack.c.l.b16 %v54
  %v210 = vunpack.c.l.b16 %v55
  %v211 = vunpack.c.l.b16 %v56
  %v212 = vunpack.c.l.b16 %v57
  %v213 = vunpack.c.l.b16 %v58
  %v214 = vunpack.c.l.b16 %v59
  %v215 = vunpack.c.l.b16 %v60
  %v216 = vunpack.c.l.b16 %v61
  %v217 = vunpack.c.l.b16 %v62
  %v218 = vunpack.c.l.b16 %v63
  %v219 = vunpack.c.l.b16 %v64
  %v220 = vunpack.c.l.b16 %v65
  %v221 = vunpack.c.l.b16 %v66
  %v222 = vunpack.c.l.b16 %v67
  %v223 = vunpack.c.l.b16 %v68
  %v224 = vunpack.c.l.b16 %v69
  %v225 = vunpack.c.l.b16 %v70
  %v226 = vunpack.c.l.b16 %v71
  %v227 = vunpack.c.l.b16 %v72
  %v228 = vunpack.c.l.b16 %v73
  %v229 = vunpack.c.l.b16 %v74
  %v230 = vunpack.c.l.b16 %v75
  %v231 = vunpack.c.l.b16 %v76
  %v232 = vunpack.c.l.b16 %v77
  %v233 = vunpack.c.l.b16 %v78
  %v234 = vunpack.c.l.b16 %v79
  %v235 = vunpack.c.l.b16 %v80
  %v236 = vunpack.c.l.b16 %v81
  %v237 = vunpack.c.l.b16 %v82
  %v238 = vunpack.c.l.b16 %v83
  %v239 = vunpack.c.l.b16 %v84
  %v240 = vunpack.c.l.b16 %v85
  %v241 = vunpack.c.l.b16 %v86
  %v242 = vunpack.c.l.b16 %v87
  %v243 = vunpack.c.l.b16 %v88
  %v244 = vunpack.c.l.b16 %v89
  %v245 = vunpack.c.l.b16 %v90
  %v246 = vunpack.c.l.b16 %v91
  %v247 = vunpack.c.l.b16 %v92
  %v248 = vunpack.c.l.b16 %v93
  %v249 = vunpack.c.l.b16 %v94
  %v250 = vpack.c.b16 %v187, %v186
  %v251 = vpack.c.b16 %v189, %v188
  %v252 = vpack.c.b16 %v191, %v190
  %v253 = vpack.c.b16 %v193, %v192
  %v254 = vpack.c.b16 %v195, %v194
  %v255 = vpack.c.b16 %v197, %v196
  %v256 = vpack.c.b16 %v199, %v198
  %v257 = vpack.c.b16 %v201, %v200
  %v258 = vpack.c.b16 %v203, %v202
  %v259 = vpack.c.b16 %v205, %v204
  %v260 = vpack.c.b16 %v207, %v206
  %v261 = vpack.c.b16 %v209, %v208
  %v262 = vpack.c.b16 %v211, %v210
  %v263 = vpack.c.b16 %v213, %v212
  %v264 = vpack.c.b16 %v215, %v214
  %v265 = vpack.c.b16 %v217, %v216
  %v266 = vpack.c.b16 %v219, %v218
  %v267 = vpack.c.b16 %v221, %v220
  %v268 = vpack.c.b16 %v223, %v222
  %v269 = vpack.c.b16 %v225, %v224
  %v270 = vpack.c.b16 %v227, %v226
  %v271 = vpack.c.b16 %v229, %v228
  %v272 = vpack.c.b16 %v231, %v230
  %v273 = vpack.c.b16 %v233, %v232
  %v274 = vpack.c.b16 %v235, %v234
  %v275 = vpack.c.b16 %v237, %v236
  %v276 = vpack.c.b16 %v239, %v238
  %v277 = vpack.c.b16 %v241, %v240
  %v278 = vpack.c.b16 %v243, %v242
  %v279 = vpack.c.b16 %v245, %v244
  %v280 = vpack.c.b16 %v247, %v246
  %v281 = vpack.c.b16 %v249, %v248
  %314 = vmatprep.subr.bf16.mxu0 0
  %315 = vmatpush1.bf16.msra.mxu0 %v250
  %316 = vmatprep.subr.bf16.mxu0 0
  %317 = vmatpush1.bf16.msra.mxu0 %v251
  %318 = vmatprep.subr.bf16.mxu0 0
  %319 = vmatpush1.bf16.msra.mxu0 %v252
  %320 = vmatprep.subr.bf16.mxu0 0
  %321 = vmatpush1.bf16.msra.mxu0 %v253
  %322 = vmatprep.subr.bf16.mxu0 0
  %323 = vmatpush1.bf16.msra.mxu0 %v254
  %324 = vmatprep.subr.bf16.mxu0 0
  %325 = vmatpush1.bf16.msra.mxu0 %v255
  %326 = vmatprep.subr.bf16.mxu0 0
  %327 = vmatpush1.bf16.msra.mxu0 %v256
  %328 = vmatprep.subr.bf16.mxu0 0
  %329 = vmatpush1.bf16.msra.mxu0 %v257
  %330 = vmatprep.subr.bf16.mxu0 0
  %331 = vmatpush1.bf16.msra.mxu0 %v258
  %332 = vmatprep.subr.bf16.mxu0 0
  %333 = vmatpush1.bf16.msra.mxu0 %v259
  %334 = vmatprep.subr.bf16.mxu0 0
  %335 = vmatpush1.bf16.msra.mxu0 %v260
  %336 = vmatprep.subr.bf16.mxu0 0
  %337 = vmatpush1.bf16.msra.mxu0 %v261
  %338 = vmatprep.subr.bf16.mxu0 0
  %339 = vmatpush1.bf16.msra.mxu0 %v262
  %340 = vmatprep.subr.bf16.mxu0 0
  %341 = vmatpush1.bf16.msra.mxu0 %v263
  %342 = vmatprep.subr.bf16.mxu0 0
  %343 = vmatpush1.bf16.msra.mxu0 %v264
  %344 = vmatprep.subr.bf16.mxu0 0
  %345 = vmatpush1.bf16.msra.mxu0 %v265
  %346 = vmatprep.mubr.bf16.mxu0 %v115
  %347 = vmatmul.mubr.bf16.gmra.mrb[0].mxu0 %v114
  %v348 = vpop.f32.mrb[0].mxu0
  %v349 = vadd.f32 %v100, %v348
  %v350 = vpop.f32.mrb[0].mxu0
  %v351 = vpop.f32.mrb[0].mxu0
  %v352 = vadd.f32 %v100, %v351
  %v353 = vpop.f32.mrb[0].mxu0
  %354 = vdwg.mxu0
  %355 = vmatprep.subr.bf16.mxu0 0
  %356 = vmatpush1.bf16.msra.mxu0 %v266
  %357 = vmatprep.subr.bf16.mxu0 0
  %358 = vmatpush1.bf16.msra.mxu0 %v267
  %359 = vmatprep.subr.bf16.mxu0 0
  %360 = vmatpush1.bf16.msra.mxu0 %v268
  %361 = vmatprep.subr.bf16.mxu0 0
  %362 = vmatpush1.bf16.msra.mxu0 %v269
  %363 = vmatprep.subr.bf16.mxu0 0
  %364 = vmatpush1.bf16.msra.mxu0 %v270
  %365 = vmatprep.subr.bf16.mxu0 0
  %366 = vmatpush1.bf16.msra.mxu0 %v271
  %367 = vmatprep.subr.bf16.mxu0 0
  %368 = vmatpush1.bf16.msra.mxu0 %v272
  %369 = vmatprep.subr.bf16.mxu0 0
  %370 = vmatpush1.bf16.msra.mxu0 %v273
  %371 = vmatprep.subr.bf16.mxu0 0
  %372 = vmatpush1.bf16.msra.mxu0 %v274
  %373 = vmatprep.subr.bf16.mxu0 0
  %374 = vmatpush1.bf16.msra.mxu0 %v275
  %375 = vmatprep.subr.bf16.mxu0 0
  %376 = vmatpush1.bf16.msra.mxu0 %v276
  %377 = vmatprep.subr.bf16.mxu0 0
  %378 = vmatpush1.bf16.msra.mxu0 %v277
  %379 = vmatprep.subr.bf16.mxu0 0
  %380 = vmatpush1.bf16.msra.mxu0 %v278
  %381 = vmatprep.subr.bf16.mxu0 0
  %382 = vmatpush1.bf16.msra.mxu0 %v279
  %383 = vmatprep.subr.bf16.mxu0 0
  %384 = vmatpush1.bf16.msra.mxu0 %v280
  %385 = vmatprep.subr.bf16.mxu0 0
  %386 = vmatpush1.bf16.msra.mxu0 %v281
  %387 = vmatprep.mubr.bf16.mxu0 %v117
  %388 = vmatmul.mubr.bf16.gmra.mrb[0].mxu0 %v116
  %v389 = vpop.f32.mrb[0].mxu0
  %v390 = vadd.f32 %v349, %v389
  %v391 = vpop.f32.mrb[0].mxu0
  %v392 = vpop.f32.mrb[0].mxu0
  %v393 = vadd.f32 %v352, %v392
  %v394 = vpop.f32.mrb[0].mxu0
  %395 = vdwg.mxu0
  %v396 = vmax.f32 %v390, 0.0
  %v397 = vmax.f32 %v393, 0.0
  %v398 = vpack.c.bf16 %v397, %v396
  %v399 = vld [vmem:[%s3] sm:$0xf]
  %v400 = vld [vmem:[%s3 + $0x4] sm:$0xf]
  %v401 = vld [vmem:[%s3 + $0x8] sm:$0xf]
  %v402 = vld [vmem:[%s3 + $0xc] sm:$0xf]
  %v403 = vld [vmem:[%s3 + $0x10] sm:$0xf]
  %v404 = vld [vmem:[%s3 + $0x14] sm:$0xf]
  %v405 = vld [vmem:[%s3 + $0x18] sm:$0xf]
  %v406 = vld [vmem:[%s3 + $0x1c] sm:$0xf]
  %v407 = vld [vmem:[%s3 + $0x20] sm:$0xf]
  %v408 = vld [vmem:[%s3 + $0x24] sm:$0xf]
  %v409 = vld [vmem:[%s3 + $0x28] sm:$0xf]
  %v410 = vld [vmem:[%s3 + $0x2c] sm:$0xf]
  %v411 = vld [vmem:[%s3 + $0x30] sm:$0xf]
  %v412 = vld [vmem:[%s3 + $0x34] sm:$0xf]
  %v413 = vld [vmem:[%s3 + $0x38] sm:$0xf]
  %v414 = vld [vmem:[%s3 + $0x3c] sm:$0xf]
  %v415 = vld [vmem:[%s4] sm:$0x1]
  %v417 = vlaneseq
  %v418 = vshrl.u32 %v417, 7
  %v419 = vsub.s32 0, %v418
  %v420 = vrot.slane %v415, %v419
  %v438 = vunpack.c.l.b16 %v399
  %v439 = vunpack.c.l.b16 %v400
  %v440 = vunpack.c.l.b16 %v401
  %v441 = vunpack.c.l.b16 %v402
  %v442 = vunpack.c.l.b16 %v403
  %v443 = vunpack.c.l.b16 %v404
  %v444 = vunpack.c.l.b16 %v405
  %v445 = vunpack.c.l.b16 %v406
  %v446 = vunpack.c.l.b16 %v407
  %v447 = vunpack.c.l.b16 %v408
  %v448 = vunpack.c.l.b16 %v409
  %v449 = vunpack.c.l.b16 %v410
  %v450 = vunpack.c.l.b16 %v411
  %v451 = vunpack.c.l.b16 %v412
  %v452 = vunpack.c.l.b16 %v413
  %v453 = vunpack.c.l.b16 %v414
  %v454 = vpack.c.b16 %v439, %v438
  %v455 = vpack.c.b16 %v441, %v440
  %v456 = vpack.c.b16 %v443, %v442
  %v457 = vpack.c.b16 %v445, %v444
  %v458 = vpack.c.b16 %v447, %v446
  %v459 = vpack.c.b16 %v449, %v448
  %v460 = vpack.c.b16 %v451, %v450
  %v461 = vpack.c.b16 %v453, %v452
  %470 = vmatprep.subr.bf16.mxu0 0
  %471 = vmatpush1.bf16.msra.mxu0 %v454
  %472 = vmatprep.subr.bf16.mxu0 0
  %473 = vmatpush1.bf16.msra.mxu0 %v455
  %474 = vmatprep.subr.bf16.mxu0 0
  %475 = vmatpush1.bf16.msra.mxu0 %v456
  %476 = vmatprep.subr.bf16.mxu0 0
  %477 = vmatpush1.bf16.msra.mxu0 %v457
  %478 = vmatprep.subr.bf16.mxu0 0
  %479 = vmatpush1.bf16.msra.mxu0 %v458
  %480 = vmatprep.subr.bf16.mxu0 0
  %481 = vmatpush1.bf16.msra.mxu0 %v459
  %482 = vmatprep.subr.bf16.mxu0 0
  %483 = vmatpush1.bf16.msra.mxu0 %v460
  %484 = vmatprep.subr.bf16.mxu0 0
  %485 = vmatpush1.bf16.msra.mxu0 %v461
  %486 = vmatprep.subr.bf16.mxu0 0
  %487 = vmatpush1.bf16.msra.mxu0 0
  %488 = vmatprep.subr.bf16.mxu0 0
  %489 = vmatpush1.bf16.msra.mxu0 0
  %490 = vmatprep.subr.bf16.mxu0 0
  %491 = vmatpush1.bf16.msra.mxu0 0
  %492 = vmatprep.subr.bf16.mxu0 0
  %493 = vmatpush1.bf16.msra.mxu0 0
  %494 = vmatprep.subr.bf16.mxu0 0
  %495 = vmatpush1.bf16.msra.mxu0 0
  %496 = vmatprep.subr.bf16.mxu0 0
  %497 = vmatpush1.bf16.msra.mxu0 0
  %498 = vmatprep.subr.bf16.mxu0 0
  %499 = vmatpush1.bf16.msra.mxu0 0
  %500 = vmatprep.subr.bf16.mxu0 0
  %501 = vmatpush1.bf16.msra.mxu0 0
  %502 = vmatprep.mubr.bf16.mxu0 0
  %503 = vmatmul.mubr.bf16.gmra.mrb[0].mxu0 %v398
  %v504 = vpop.f32.mrb[0].mxu0
  %v505 = vadd.f32 %v420, %v504
  %v506 = vpop.f32.mrb[0].mxu0
  %v507 = vpop.f32.mrb[0].mxu0
  %v508 = vadd.f32 %v420, %v507
  %v509 = vpop.f32.mrb[0].mxu0
  %510 = vdwg.mxu0
  %v511 = vmax.f32 %v505, 0.0
  %v512 = vmax.f32 %v508, 0.0
  %v513 = vpack.c.bf16 %v512, %v511
  %v514 = vld [vmem:[%s5] sm:$0xf]
  %v515 = vld [vmem:[%s5 + $0x4] sm:$0xf]
  %v516 = vld [vmem:[%s5 + $0x8] sm:$0xf]
  %v517 = vld [vmem:[%s5 + $0xc] sm:$0xf]
  %v518 = vld [vmem:[%s5 + $0x10] sm:$0xf]
  %v519 = vld [vmem:[%s5 + $0x14] sm:$0xf]
  %v520 = vld [vmem:[%s5 + $0x18] sm:$0xf]
  %v521 = vld [vmem:[%s5 + $0x1c] sm:$0xf]
  %v522 = vld [vmem:[%s5 + $0x20] sm:$0xf]
  %v523 = vld [vmem:[%s5 + $0x24] sm:$0xf]
  %v524 = vld [vmem:[%s5 + $0x28] sm:$0xf]
  %v525 = vld [vmem:[%s5 + $0x2c] sm:$0xf]
  %v526 = vld [vmem:[%s5 + $0x30] sm:$0xf]
  %v527 = vld [vmem:[%s5 + $0x34] sm:$0xf]
  %v528 = vld [vmem:[%s5 + $0x38] sm:$0xf]
  %v529 = vld [vmem:[%s5 + $0x3c] sm:$0xf]
  %v530 = vld [vmem:[%s6] sm:$0x1]
  %v532 = vlaneseq
  %v533 = vshrl.u32 %v532, 7
  %v534 = vsub.s32 0, %v533
  %v535 = vrot.slane %v530, %v534
  %v553 = vunpack.c.l.b16 %v514
  %v554 = vunpack.c.l.b16 %v515
  %v555 = vunpack.c.l.b16 %v516
  %v556 = vunpack.c.l.b16 %v517
  %v557 = vunpack.c.l.b16 %v518
  %v558 = vunpack.c.l.b16 %v519
  %v559 = vunpack.c.l.b16 %v520
  %v560 = vunpack.c.l.b16 %v521
  %v561 = vunpack.c.l.b16 %v522
  %v562 = vunpack.c.l.b16 %v523
  %v563 = vunpack.c.l.b16 %v524
  %v564 = vunpack.c.l.b16 %v525
  %v565 = vunpack.c.l.b16 %v526
  %v566 = vunpack.c.l.b16 %v527
  %v567 = vunpack.c.l.b16 %v528
  %v568 = vunpack.c.l.b16 %v529
  %v569 = vpack.c.b16 %v554, %v553
  %v570 = vpack.c.b16 %v556, %v555
  %v571 = vpack.c.b16 %v558, %v557
  %v572 = vpack.c.b16 %v560, %v559
  %v573 = vpack.c.b16 %v562, %v561
  %v574 = vpack.c.b16 %v564, %v563
  %v575 = vpack.c.b16 %v566, %v565
  %v576 = vpack.c.b16 %v568, %v567
  %585 = vmatprep.subr.bf16.mxu0 0
  %586 = vmatpush1.bf16.msra.mxu0 %v569
  %587 = vmatprep.subr.bf16.mxu0 0
  %588 = vmatpush1.bf16.msra.mxu0 %v570
  %589 = vmatprep.subr.bf16.mxu0 0
  %590 = vmatpush1.bf16.msra.mxu0 %v571
  %591 = vmatprep.subr.bf16.mxu0 0
  %592 = vmatpush1.bf16.msra.mxu0 %v572
  %593 = vmatprep.subr.bf16.mxu0 0
  %594 = vmatpush1.bf16.msra.mxu0 %v573
  %595 = vmatprep.subr.bf16.mxu0 0
  %596 = vmatpush1.bf16.msra.mxu0 %v574
  %597 = vmatprep.subr.bf16.mxu0 0
  %598 = vmatpush1.bf16.msra.mxu0 %v575
  %599 = vmatprep.subr.bf16.mxu0 0
  %600 = vmatpush1.bf16.msra.mxu0 %v576
  %601 = vmatprep.subr.bf16.mxu0 0
  %602 = vmatpush1.bf16.msra.mxu0 0
  %603 = vmatprep.subr.bf16.mxu0 0
  %604 = vmatpush1.bf16.msra.mxu0 0
  %605 = vmatprep.subr.bf16.mxu0 0
  %606 = vmatpush1.bf16.msra.mxu0 0
  %607 = vmatprep.subr.bf16.mxu0 0
  %608 = vmatpush1.bf16.msra.mxu0 0
  %609 = vmatprep.subr.bf16.mxu0 0
  %610 = vmatpush1.bf16.msra.mxu0 0
  %611 = vmatprep.subr.bf16.mxu0 0
  %612 = vmatpush1.bf16.msra.mxu0 0
  %613 = vmatprep.subr.bf16.mxu0 0
  %614 = vmatpush1.bf16.msra.mxu0 0
  %615 = vmatprep.subr.bf16.mxu0 0
  %616 = vmatpush1.bf16.msra.mxu0 0
  %617 = vmatprep.mubr.bf16.mxu0 0
  %618 = vmatmul.mubr.bf16.gmra.mrb[0].mxu0 %v513
  %v619 = vpop.f32.mrb[0].mxu0
  %v620 = vadd.f32 %v535, %v619
  %v621 = vpop.f32.mrb[0].mxu0
  %v622 = vpop.f32.mrb[0].mxu0
  %v623 = vadd.f32 %v535, %v622
  %v624 = vpop.f32.mrb[0].mxu0
  %625 = vdwg.mxu0
  %626 = vmax.xlane.f32.xlu0 %v620
  %v627 = vpop.xlane.xlu0 %626
  %628 = vmax.xlane.f32.xlu0 %v623
  %v629 = vpop.xlane.xlu0 %628
  %v630 = vsub.f32 %v620, %v627
  %v631 = vsub.f32 %v623, %v629
  %v632 = vmul.f32 %v630, 1.442695
  %v633 = vpow.pop %v632
  %v634 = vmul.f32 %v631, 1.442695
  %v635 = vpow.pop %v634
  %636 = vadd.xlane.f32.xlu0 %v633
  %v637 = vpop.xlane.xlu0 %636
  %638 = vadd.xlane.f32.xlu0 %v635
  %v639 = vpop.xlane.xlu0 %638
  %v640 = vlog2.pop %v637
  %v641 = vmul.f32 %v640, 0.6931472
  %v642 = vlog2.pop %v639
  %v643 = vmul.f32 %v642, 0.6931472
  %v644 = vsub.f32 %v630, %v641
  %v645 = vsub.f32 %v631, %v643
  %646 = vst [vmem:[%s7] sm:$0xff] %v644
  %647 = vst [vmem:[%s7 + $0x8] sm:$0xff] %v645
  // Predicated region
  $region30: #{forward.5} parent=0 // pred_check
    _
  $region31: #{forward.5} parent=0 // pred_check_branch
    %649 = sbr.rel (0) target = $region33
  $region32: #{forward.5} parent=0 // pred_region
    _
  $region33: #{forward.5} parent=0 // pred_fallthru
    _
  // Predicated region
  $region34: #{forward.5} parent=0 // pred_check
    _
  $region35: #{forward.5} parent=0 // pred_check_branch
    %651 = sbr.rel (0) target = $region37
  $region36: #{forward.5} parent=0 // pred_region
    _
  $region37: #{forward.5} parent=0 // pred_fallthru
    _

</llo_original>
